<compile_context>
chip_gen: v6e
topology: v6e:2x2x1
jax: 0.10.0
libtpu: 0.0.40
codegen_flags: <defaults>
</compile_context>

<pallas_src>
import functools

import jax
import jax.numpy as jnp
from jax import lax
from jax.experimental import pallas as pl
from jax.experimental.pallas import tpu as pltpu

_INV_SQRT2 = 0.7071067811865476
_SQRT_2_OVER_PI = 0.7978845608028654


# ----------------------------------------------------------------------------
# elementwise helpers
# ----------------------------------------------------------------------------
def _erf_approx(x):
    # Abramowitz & Stegun 7.1.26, |err| < 1.5e-7 (exact-mode self-check only).
    a1, a2, a3, a4, a5 = (0.254829592, -0.284496736, 1.421413741,
                          -1.453152027, 1.061405429)
    p = 0.3275911
    ax = jnp.abs(x)
    t = pl.reciprocal(1.0 + p * ax, approx=False)
    poly = t * (a1 + t * (a2 + t * (a3 + t * (a4 + t * a5))))
    y = 1.0 - poly * jnp.exp(-ax * ax)
    return jnp.where(x >= 0, y, -y)


def _gelu_exact(x):
    return 0.5 * x * (1.0 + _erf_approx(x * _INV_SQRT2))


def _gelu_tanh(x):
    # tanh-form GELU: transcendental goes to the EUP slot (VALU was the
    # binding slot with the erf polynomial).  |diff vs erf GELU| <~ 5e-4.
    return 0.5 * x * (1.0 + jnp.tanh(_SQRT_2_OVER_PI * (x + 0.044715 * x * x * x)))


def _sigmoid(x):
    # exact identity sigmoid(x) = 0.5*(1 + tanh(x/2)); tanh is an EUP op.
    return 0.5 * (1.0 + jnp.tanh(0.5 * x))


# ----------------------------------------------------------------------------
# Fused MBConv kernel: one batch element per grid step, channel-major layout.
#   x_ref  : (Cin,  H*W)   activations (lanes = flattened spatial, lane-dense)
#   w1_ref : (Chid, Cin)   1x1 expand weight (BN0+BN1 scales folded), mxu dtype
#   hp_ref : (Chid, 2+9+2*sdim) packed [b1 | b_dw | dw taps | se_w1 | se_w2^T]
#   w2_ref : (Cout, Chid)  1x1 project weight (BN2 scale folded), mxu dtype
#   b2_ref : (Cout, 1)     BN2 shift
#   m_ref  : (9, H*W)      per-tap edge masks, k = (dy+1)*3 + (dx+1)
#   o_ref  : (Cout, H*W)
# ----------------------------------------------------------------------------
def _mbconv_kernel(x_ref, w1_ref, hp_ref, w2_ref, b2_ref, m_ref, o_ref,
                   *, H, W, sdim, exact_gelu):
    HW = H * W
    gelu = _gelu_exact if exact_gelu else _gelu_tanh
    mxu_dtype = w1_ref.dtype

    x = x_ref[...]                                     # (Cin, HW) f32

    b1 = hp_ref[:, 0:1]                                # (Chid, 1)
    bdw = hp_ref[:, 1:2]                               # (Chid, 1)
    wdw = hp_ref[:, 2:11]                              # (Chid, 9)
    sew1 = hp_ref[:, 11:11 + sdim]                     # (Chid, sdim)
    sew2t = hp_ref[:, 11 + sdim:11 + 2 * sdim]         # (Chid, sdim)

    # --- 1x1 expand (BN0/BN1 scales folded into w1) + merged shift + GELU ---
    h = jnp.dot(w1_ref[...], x.astype(mxu_dtype),
                preferred_element_type=jnp.float32)    # (Chid, HW) f32
    h = gelu(h + b1)

    # --- 3x3 depthwise conv (stride 1, pad 1) via XLU lane rotations --------
    # sh[:, p] = h[:, p + dy*W + dx]; circular wrap-around lanes and
    # out-of-image neighbors are zeroed by the precomputed per-tap masks.
    acc = h * wdw[:, 4:5]                              # center tap: no mask
    for k in range(9):                                 # unrolled taps
        if k == 4:
            continue
        dy, dx = k // 3 - 1, k % 3 - 1
        off = dy * W + dx
        sh = pltpu.roll(h, shift=(-off) % HW, axis=1)
        acc = acc + (sh * m_ref[k:k + 1, :]) * wdw[:, k:k + 1]
    hd = gelu(acc + bdw)                               # BN_dw scale folded in taps

    # --- Squeeze-Excite: pooled vector stays in vregs ------------------------
    pooled = jnp.mean(hd, axis=1, keepdims=True)                        # (Chid,1)
    g = gelu(jnp.sum(sew1 * pooled, axis=0, keepdims=True))             # (1,sdim)
    gate = _sigmoid(jnp.sum(sew2t * g, axis=1, keepdims=True))          # (Chid,1)
    hs = (hd * gate).astype(mxu_dtype)

    # --- final 1x1 projection (BN2 scale folded) + shift + residual ----------
    out = jnp.dot(w2_ref[...], hs, preferred_element_type=jnp.float32)  # (Cout,HW)
    o_ref[...] = out + b2_ref[...] + x


# ----------------------------------------------------------------------------
# Wrapper: NCHW in / NCHW out (PyTorch convention); only free reshapes.
# ----------------------------------------------------------------------------
def mbconv_forward(x_nchw, p, *, mxu_dtype=jnp.bfloat16, exact_gelu=False):
    B, Cin, H, W = x_nchw.shape
    HW = H * W
    hidden = p["w1"].shape[1]
    oup = p["w2"].shape[1]
    sdim = p["se_w1"].shape[1]
    assert oup == Cin, "residual path requires inp == oup (downsample=False)"
    f32 = jnp.float32

    x3 = x_nchw.reshape(B, Cin, HW).astype(f32)        # free reshape

    # ---- fold BatchNorm scales into conv weights (one-time, wrapper side) ---
    s0, b0 = p["bn0_scale"].reshape(Cin).astype(f32), p["bn0_shift"].reshape(Cin).astype(f32)
    s1, b1 = p["bn1_scale"].reshape(hidden).astype(f32), p["bn1_shift"].reshape(hidden).astype(f32)
    sd, bd = p["bn_dw_scale"].reshape(hidden).astype(f32), p["bn_dw_shift"].reshape(hidden).astype(f32)
    s2, b2 = p["bn2_scale"].reshape(oup).astype(f32), p["bn2_shift"].reshape(oup).astype(f32)

    w1t = p["w1"].astype(f32).T                        # (hidden, Cin)
    w1f = (s1[:, None] * w1t) * s0[None, :]            # BN0 + BN1 scales folded
    b1f = s1 * (w1t @ b0) + b1                         # merged BN0/BN1 shift
    wdwf = p["w_dw"].astype(f32).T * sd[:, None]       # (hidden, 9), BN_dw scale folded
    w2f = s2[:, None] * p["w2"].astype(f32).T          # (oup, hidden), BN2 scale folded

    # packed per-hidden-channel small operands -> one lane-packed block
    hparams = jnp.concatenate(
        [b1f[:, None], bd[:, None], wdwf,
         p["se_w1"].astype(f32), p["se_w2"].astype(f32).T],
        axis=1)                                        # (hidden, 11 + 2*sdim)
    b2c = b2[:, None]                                  # (oup, 1)

    # precomputed per-tap edge masks, k = (dy+1)*3 + (dx+1)
    lane = jnp.arange(HW)
    r, c = lane // W, lane % W
    ones = jnp.ones((HW,), bool)
    rowm = {-1: r > 0, 0: ones, 1: r < H - 1}
    colm = {-1: c > 0, 0: ones, 1: c < W - 1}
    masks = jnp.stack([(rowm[dy] & colm[dx]).astype(f32)
                       for dy in (-1, 0, 1) for dx in (-1, 0, 1)])   # (9, HW)

    w1f = w1f.astype(mxu_dtype)
    w2f = w2f.astype(mxu_dtype)

    kern = functools.partial(_mbconv_kernel, H=H, W=W, sdim=sdim,
                             exact_gelu=exact_gelu)
    full2 = lambda b: (0, 0)
    out3 = pl.pallas_call(
        kern,
        out_shape=jax.ShapeDtypeStruct((B, oup, HW), f32),
        grid=(B,),
        in_specs=[
            pl.BlockSpec((None, Cin, HW), lambda b: (b, 0, 0)),   # batch squeezed
            pl.BlockSpec((hidden, Cin), full2),
            pl.BlockSpec((hidden, hparams.shape[1]), full2),
            pl.BlockSpec((oup, hidden), full2),
            pl.BlockSpec((oup, 1), full2),
            pl.BlockSpec((9, HW), full2),
        ],
        out_specs=pl.BlockSpec((None, oup, HW), lambda b: (b, 0, 0)),
        # default scoped VMEM limit is plenty at these shapes; raise
        # vmem_limit_bytes when moving to production H/W/hidden tiles.
        compiler_params=pltpu.CompilerParams(dimension_semantics=("parallel",)),
    )(x3, w1f, hparams, w2f, b2c, masks)

    return out3.reshape(B, oup, H, W)                  # free reshape


# ----------------------------------------------------------------------------
# Deterministic synthetic parameters (shapes from MBConv.__init__)
# ----------------------------------------------------------------------------
def init_params(key, inp, oup, expansion=2, se_expansion=0.25):
    hidden = int(inp * expansion)
    sdim = int(inp * se_expansion)
    ks = jax.random.split(key, 9)

    def bn(k, c):
        k1, k2, k3, k4 = jax.random.split(k, 4)
        gamma = 1.0 + 0.1 * jax.random.normal(k1, (c,), jnp.float32)
        beta = 0.1 * jax.random.normal(k2, (c,), jnp.float32)
        mean = 0.1 * jax.random.normal(k3, (c,), jnp.float32)
        var = 1.0 + 0.1 * jnp.abs(jax.random.normal(k4, (c,), jnp.float32))
        scale = gamma / jnp.sqrt(var + 1e-5)
        shift = beta - mean * scale
        return scale.reshape(1, c), shift.reshape(1, c)

    bn0_s, bn0_b = bn(ks[0], inp)
    bn1_s, bn1_b = bn(ks[2], hidden)
    bn_dw_s, bn_dw_b = bn(ks[4], hidden)
    bn2_s, bn2_b = bn(ks[8], oup)
    return {
        "bn0_scale": bn0_s, "bn0_shift": bn0_b,
        "w1": 0.2 * jax.random.normal(ks[1], (inp, hidden), jnp.float32),
        "bn1_scale": bn1_s, "bn1_shift": bn1_b,
        "w_dw": 0.2 * jax.random.normal(ks[3], (9, hidden), jnp.float32),
        "bn_dw_scale": bn_dw_s, "bn_dw_shift": bn_dw_b,
        "se_w1": 0.2 * jax.random.normal(ks[5], (hidden, sdim), jnp.float32),
        "se_w2": 0.2 * jax.random.normal(ks[6], (sdim, hidden), jnp.float32),
        "w2": 0.2 * jax.random.normal(ks[7], (hidden, oup), jnp.float32),
        "bn2_scale": bn2_s, "bn2_shift": bn2_b,
    }


# ----------------------------------------------------------------------------
# Pure-JAX reference (independent path: lax.conv + exact erf) for self-check
# ----------------------------------------------------------------------------
def reference(x_nchw, p):
    x = jnp.transpose(x_nchw, (0, 2, 3, 1)).astype(jnp.float32)

    def gelu_exact(v):
        return 0.5 * v * (1.0 + jax.scipy.special.erf(v * _INV_SQRT2))

    def bnapply(v, s, b):
        return v * s.reshape(1, 1, 1, -1) + b.reshape(1, 1, 1, -1)

    xn = bnapply(x, p["bn0_scale"], p["bn0_shift"])
    h = jnp.einsum("bhwc,cd->bhwd", xn, p["w1"])
    h = gelu_exact(bnapply(h, p["bn1_scale"], p["bn1_shift"]))
    C = h.shape[-1]
    rhs = p["w_dw"].reshape(3, 3, C)[:, :, None, :]           # HWIO (I = 1)
    hd = lax.conv_general_dilated(
        h, rhs, window_strides=(1, 1), padding=((1, 1), (1, 1)),
        dimension_numbers=("NHWC", "HWIO", "NHWC"), feature_group_count=C)
    hd = gelu_exact(bnapply(hd, p["bn_dw_scale"], p["bn_dw_shift"]))
    pooled = jnp.mean(hd, axis=(1, 2))
    g = gelu_exact(pooled @ p["se_w1"])
    g = jax.nn.sigmoid(g @ p["se_w2"])
    hs = hd * g[:, None, None, :]
    out = jnp.einsum("bhwc,co->bhwo", hs, p["w2"])
    out = bnapply(out, p["bn2_scale"], p["bn2_shift"]) + x
    return jnp.transpose(out, (0, 3, 1, 2))


if __name__ == "__main__":
    key = jax.random.PRNGKey(0)
    kx, kp = jax.random.split(key)
    B, C, H, W = 2, 8, 16, 16            # inp == oup == 8 (residual), hidden = 16
    x = jax.random.normal(kx, (B, C, H, W), jnp.float32)
    params = init_params(kp, inp=C, oup=C, expansion=2)

    ref = reference(x, params)

    # 1) exact mode (f32 MXU + erf GELU): tight structural self-check of the
    #    roll-based depthwise conv, folded BN, SE and residual path.
    fwd_exact = jax.jit(functools.partial(
        mbconv_forward, mxu_dtype=jnp.float32, exact_gelu=True))
    out_exact = jax.block_until_ready(fwd_exact(x, params))
    err_exact = float(jnp.max(jnp.abs(out_exact - ref)))
    if err_exact > 2e-4:
        raise AssertionError(f"exact-mode mismatch vs reference: {err_exact}")

    # 2) fast mode (default: bf16 MXU operands + tanh/EUP GELU): documented
    #    accuracy/perf trade-off -> loosened tolerance vs the exact reference.
    fwd = jax.jit(mbconv_forward)
    out = jax.block_until_ready(fwd(x, params))
    assert out.shape == (B, C, H, W) and out.dtype == jnp.float32
    err_fast = float(jnp.max(jnp.abs(out - ref)))
    if (not bool(jnp.all(jnp.isfinite(out)))) or err_fast > 0.25:
        raise AssertionError(f"fast-mode mismatch vs reference: {err_fast}")

    print("KERNEL_OK")
</pallas_src>

<mosaic_0001>
module attributes {stable_mosaic.version = 11 : i64} {
  func.func @_mbconv_kernel(%arg0: i32, %arg1: memref<1x8x256xf32, #tpu.memory_space<vmem>>, %arg2: memref<16x8xf32, #tpu.memory_space<vmem>>, %arg3: memref<16x15xf32, #tpu.memory_space<vmem>>, %arg4: memref<8x16xf32, #tpu.memory_space<vmem>>, %arg5: memref<8x1xf32, #tpu.memory_space<vmem>>, %arg6: memref<9x256xf32, #tpu.memory_space<vmem>>, %arg7: memref<1x8x256xf32, #tpu.memory_space<vmem>>) attributes {dimension_semantics = [#tpu.dimension_semantics<parallel>], iteration_bounds = array<i64: 2>, scalar_prefetch = 0 : i64, scratch_operands = 0 : i64, tpu.core_type = #tpu.core_type<tc>, window_params = [{transform_indices = @transform_0, window_bounds = array<i64: 1, 8, 256>}, {pipeline_mode = #tpu.pipeline_mode<synchronous>, transform_indices = @transform_1, window_bounds = array<i64: 16, 8>}, {pipeline_mode = #tpu.pipeline_mode<synchronous>, transform_indices = @transform_2, window_bounds = array<i64: 16, 15>}, {pipeline_mode = #tpu.pipeline_mode<synchronous>, transform_indices = @transform_3, window_bounds = array<i64: 8, 16>}, {pipeline_mode = #tpu.pipeline_mode<synchronous>, transform_indices = @transform_4, window_bounds = array<i64: 8, 1>}, {pipeline_mode = #tpu.pipeline_mode<synchronous>, transform_indices = @transform_5, window_bounds = array<i64: 9, 256>}, {transform_indices = @transform_6, window_bounds = array<i64: 1, 8, 256>}]} {
    %c0 = arith.constant 0 : index
    %c0_0 = arith.constant 0 : index
    %c0_1 = arith.constant 0 : index
    %0 = vector.load %arg1[%c0, %c0_0, %c0_1] : memref<1x8x256xf32, #tpu.memory_space<vmem>>, vector<1x8x256xf32>
    %1 = vector.shape_cast %0 : vector<1x8x256xf32> to vector<8x256xf32>
    %c0_2 = arith.constant 0 : index
    %c0_3 = arith.constant 0 : index
    %2 = vector.load %arg3[%c0_2, %c0_3] : memref<16x15xf32, #tpu.memory_space<vmem>>, vector<16x1xf32>
    %c0_4 = arith.constant 0 : index
    %c1 = arith.constant 1 : index
    %3 = vector.load %arg3[%c0_4, %c1] : memref<16x15xf32, #tpu.memory_space<vmem>>, vector<16x1xf32>
    %c0_5 = arith.constant 0 : index
    %c2 = arith.constant 2 : index
    %4 = vector.load %arg3[%c0_5, %c2] : memref<16x15xf32, #tpu.memory_space<vmem>>, vector<16x9xf32>
    %c0_6 = arith.constant 0 : index
    %c11 = arith.constant 11 : index
    %5 = vector.load %arg3[%c0_6, %c11] : memref<16x15xf32, #tpu.memory_space<vmem>>, vector<16x2xf32>
    %c0_7 = arith.constant 0 : index
    %c13 = arith.constant 13 : index
    %6 = vector.load %arg3[%c0_7, %c13] : memref<16x15xf32, #tpu.memory_space<vmem>>, vector<16x2xf32>
    %c0_8 = arith.constant 0 : index
    %c0_9 = arith.constant 0 : index
    %7 = vector.load %arg2[%c0_8, %c0_9] : memref<16x8xf32, #tpu.memory_space<vmem>>, vector<16x8xf32>
    %cst = arith.constant dense<0.000000e+00> : vector<16x256xf32>
    %8 = tpu.matmul %7, %1, %cst {dimension_numbers = #tpu.dot_dimension_numbers<[1], [0], [0], [1], [0, 0, 1, 1], [], []>} : vector<16x8xf32>, vector<8x256xf32>, vector<16x256xf32> -> vector<16x256xf32>
    %9 = vector.broadcast %2 : vector<16x1xf32> to vector<16x256xf32>
    %10 = arith.addf %8, %9 : vector<16x256xf32>
    %cst_10 = arith.constant 5.000000e-01 : f32
    %11 = vector.broadcast %cst_10 : f32 to vector<16x256xf32>
    %12 = arith.mulf %11, %10 : vector<16x256xf32>
    %cst_11 = arith.constant 0.707106769 : f32
    %13 = vector.broadcast %cst_11 : f32 to vector<16x256xf32>
    %14 = arith.mulf %10, %13 : vector<16x256xf32>
    %15 = math.absf %14 : vector<16x256xf32>
    %cst_12 = arith.constant 0.327591091 : f32
    %16 = vector.broadcast %cst_12 : f32 to vector<16x256xf32>
    %17 = arith.mulf %16, %15 : vector<16x256xf32>
    %cst_13 = arith.constant 1.000000e+00 : f32
    %18 = vector.broadcast %cst_13 : f32 to vector<16x256xf32>
    %19 = arith.addf %18, %17 : vector<16x256xf32>
    %20 = tpu.reciprocal %19 : vector<16x256xf32> -> vector<16x256xf32>
    %cst_14 = arith.constant 1.06140542 : f32
    %21 = vector.broadcast %cst_14 : f32 to vector<16x256xf32>
    %22 = arith.mulf %20, %21 : vector<16x256xf32>
    %cst_15 = arith.constant -1.45315206 : f32
    %23 = vector.broadcast %cst_15 : f32 to vector<16x256xf32>
    %24 = arith.addf %23, %22 : vector<16x256xf32>
    %25 = arith.mulf %20, %24 : vector<16x256xf32>
    %cst_16 = arith.constant 1.42141378 : f32
    %26 = vector.broadcast %cst_16 : f32 to vector<16x256xf32>
    %27 = arith.addf %26, %25 : vector<16x256xf32>
    %28 = arith.mulf %20, %27 : vector<16x256xf32>
    %cst_17 = arith.constant -0.284496725 : f32
    %29 = vector.broadcast %cst_17 : f32 to vector<16x256xf32>
    %30 = arith.addf %29, %28 : vector<16x256xf32>
    %31 = arith.mulf %20, %30 : vector<16x256xf32>
    %cst_18 = arith.constant 0.254829586 : f32
    %32 = vector.broadcast %cst_18 : f32 to vector<16x256xf32>
    %33 = arith.addf %32, %31 : vector<16x256xf32>
    %34 = arith.mulf %20, %33 : vector<16x256xf32>
    %cst_19 = arith.constant 0.000000e+00 : f32
    %35 = vector.broadcast %cst_19 : f32 to vector<16x256xf32>
    %36 = arith.subf %35, %15 : vector<16x256xf32>
    %37 = arith.mulf %36, %15 : vector<16x256xf32>
    %38 = math.exp %37 : vector<16x256xf32>
    %39 = arith.mulf %34, %38 : vector<16x256xf32>
    %cst_20 = arith.constant 1.000000e+00 : f32
    %40 = vector.broadcast %cst_20 : f32 to vector<16x256xf32>
    %41 = arith.subf %40, %39 : vector<16x256xf32>
    %cst_21 = arith.constant 0.000000e+00 : f32
    %42 = vector.broadcast %cst_21 : f32 to vector<16x256xf32>
    %43 = arith.cmpf oge, %14, %42 : vector<16x256xf32>
    %cst_22 = arith.constant 0.000000e+00 : f32
    %44 = vector.broadcast %cst_22 : f32 to vector<16x256xf32>
    %45 = arith.subf %44, %41 : vector<16x256xf32>
    %46 = arith.select %43, %41, %45 : vector<16x256xi1>, vector<16x256xf32>
    %cst_23 = arith.constant 1.000000e+00 : f32
    %47 = vector.broadcast %cst_23 : f32 to vector<16x256xf32>
    %48 = arith.addf %47, %46 : vector<16x256xf32>
    %49 = arith.mulf %12, %48 : vector<16x256xf32>
    %50 = vector.extract_strided_slice %4 {offsets = [0, 4], sizes = [16, 1], strides = [1, 1]} : vector<16x9xf32> to vector<16x1xf32>
    %51 = vector.broadcast %50 : vector<16x1xf32> to vector<16x256xf32>
    %52 = arith.mulf %49, %51 : vector<16x256xf32>
    %c17_i32 = arith.constant 17 : i32
    %53 = tpu.dynamic_rotate %49 by %c17_i32 dim 1 : vector<16x256xf32>, i32 -> vector<16x256xf32>
    %c0_24 = arith.constant 0 : index
    %c0_25 = arith.constant 0 : index
    %54 = vector.load %arg6[%c0_24, %c0_25] : memref<9x256xf32, #tpu.memory_space<vmem>>, vector<1x256xf32>
    %55 = vector.broadcast %54 : vector<1x256xf32> to vector<16x256xf32>
    %56 = arith.mulf %53, %55 : vector<16x256xf32>
    %57 = vector.extract_strided_slice %4 {offsets = [0, 0], sizes = [16, 1], strides = [1, 1]} : vector<16x9xf32> to vector<16x1xf32>
    %58 = vector.broadcast %57 : vector<16x1xf32> to vector<16x256xf32>
    %59 = arith.mulf %56, %58 : vector<16x256xf32>
    %60 = arith.addf %52, %59 : vector<16x256xf32>
    %c16_i32 = arith.constant 16 : i32
    %61 = tpu.dynamic_rotate %49 by %c16_i32 dim 1 : vector<16x256xf32>, i32 -> vector<16x256xf32>
    %c1_26 = arith.constant 1 : index
    %c0_27 = arith.constant 0 : index
    %62 = vector.load %arg6[%c1_26, %c0_27] : memref<9x256xf32, #tpu.memory_space<vmem>>, vector<1x256xf32>
    %63 = vector.broadcast %62 : vector<1x256xf32> to vector<16x256xf32>
    %64 = arith.mulf %61, %63 : vector<16x256xf32>
    %65 = vector.extract_strided_slice %4 {offsets = [0, 1], sizes = [16, 1], strides = [1, 1]} : vector<16x9xf32> to vector<16x1xf32>
    %66 = vector.broadcast %65 : vector<16x1xf32> to vector<16x256xf32>
    %67 = arith.mulf %64, %66 : vector<16x256xf32>
    %68 = arith.addf %60, %67 : vector<16x256xf32>
    %c15_i32 = arith.constant 15 : i32
    %69 = tpu.dynamic_rotate %49 by %c15_i32 dim 1 : vector<16x256xf32>, i32 -> vector<16x256xf32>
    %c2_28 = arith.constant 2 : index
    %c0_29 = arith.constant 0 : index
    %70 = vector.load %arg6[%c2_28, %c0_29] : memref<9x256xf32, #tpu.memory_space<vmem>>, vector<1x256xf32>
    %71 = vector.broadcast %70 : vector<1x256xf32> to vector<16x256xf32>
    %72 = arith.mulf %69, %71 : vector<16x256xf32>
    %73 = vector.extract_strided_slice %4 {offsets = [0, 2], sizes = [16, 1], strides = [1, 1]} : vector<16x9xf32> to vector<16x1xf32>
    %74 = vector.broadcast %73 : vector<16x1xf32> to vector<16x256xf32>
    %75 = arith.mulf %72, %74 : vector<16x256xf32>
    %76 = arith.addf %68, %75 : vector<16x256xf32>
    %c1_i32 = arith.constant 1 : i32
    %77 = tpu.dynamic_rotate %49 by %c1_i32 dim 1 : vector<16x256xf32>, i32 -> vector<16x256xf32>
    %c3 = arith.constant 3 : index
    %c0_30 = arith.constant 0 : index
    %78 = vector.load %arg6[%c3, %c0_30] : memref<9x256xf32, #tpu.memory_space<vmem>>, vector<1x256xf32>
    %79 = vector.broadcast %78 : vector<1x256xf32> to vector<16x256xf32>
    %80 = arith.mulf %77, %79 : vector<16x256xf32>
    %81 = vector.extract_strided_slice %4 {offsets = [0, 3], sizes = [16, 1], strides = [1, 1]} : vector<16x9xf32> to vector<16x1xf32>
    %82 = vector.broadcast %81 : vector<16x1xf32> to vector<16x256xf32>
    %83 = arith.mulf %80, %82 : vector<16x256xf32>
    %84 = arith.addf %76, %83 : vector<16x256xf32>
    %c255_i32 = arith.constant 255 : i32
    %85 = tpu.dynamic_rotate %49 by %c255_i32 dim 1 : vector<16x256xf32>, i32 -> vector<16x256xf32>
    %c5 = arith.constant 5 : index
    %c0_31 = arith.constant 0 : index
    %86 = vector.load %arg6[%c5, %c0_31] : memref<9x256xf32, #tpu.memory_space<vmem>>, vector<1x256xf32>
    %87 = vector.broadcast %86 : vector<1x256xf32> to vector<16x256xf32>
    %88 = arith.mulf %85, %87 : vector<16x256xf32>
    %89 = vector.extract_strided_slice %4 {offsets = [0, 5], sizes = [16, 1], strides = [1, 1]} : vector<16x9xf32> to vector<16x1xf32>
    %90 = vector.broadcast %89 : vector<16x1xf32> to vector<16x256xf32>
    %91 = arith.mulf %88, %90 : vector<16x256xf32>
    %92 = arith.addf %84, %91 : vector<16x256xf32>
    %c241_i32 = arith.constant 241 : i32
    %93 = tpu.dynamic_rotate %49 by %c241_i32 dim 1 : vector<16x256xf32>, i32 -> vector<16x256xf32>
    %c6 = arith.constant 6 : index
    %c0_32 = arith.constant 0 : index
    %94 = vector.load %arg6[%c6, %c0_32] : memref<9x256xf32, #tpu.memory_space<vmem>>, vector<1x256xf32>
    %95 = vector.broadcast %94 : vector<1x256xf32> to vector<16x256xf32>
    %96 = arith.mulf %93, %95 : vector<16x256xf32>
    %97 = vector.extract_strided_slice %4 {offsets = [0, 6], sizes = [16, 1], strides = [1, 1]} : vector<16x9xf32> to vector<16x1xf32>
    %98 = vector.broadcast %97 : vector<16x1xf32> to vector<16x256xf32>
    %99 = arith.mulf %96, %98 : vector<16x256xf32>
    %100 = arith.addf %92, %99 : vector<16x256xf32>
    %c240_i32 = arith.constant 240 : i32
    %101 = tpu.dynamic_rotate %49 by %c240_i32 dim 1 : vector<16x256xf32>, i32 -> vector<16x256xf32>
    %c7 = arith.constant 7 : index
    %c0_33 = arith.constant 0 : index
    %102 = vector.load %arg6[%c7, %c0_33] : memref<9x256xf32, #tpu.memory_space<vmem>>, vector<1x256xf32>
    %103 = vector.broadcast %102 : vector<1x256xf32> to vector<16x256xf32>
    %104 = arith.mulf %101, %103 : vector<16x256xf32>
    %105 = vector.extract_strided_slice %4 {offsets = [0, 7], sizes = [16, 1], strides = [1, 1]} : vector<16x9xf32> to vector<16x1xf32>
    %106 = vector.broadcast %105 : vector<16x1xf32> to vector<16x256xf32>
    %107 = arith.mulf %104, %106 : vector<16x256xf32>
    %108 = arith.addf %100, %107 : vector<16x256xf32>
    %c239_i32 = arith.constant 239 : i32
    %109 = tpu.dynamic_rotate %49 by %c239_i32 dim 1 : vector<16x256xf32>, i32 -> vector<16x256xf32>
    %c8 = arith.constant 8 : index
    %c0_34 = arith.constant 0 : index
    %110 = vector.load %arg6[%c8, %c0_34] : memref<9x256xf32, #tpu.memory_space<vmem>>, vector<1x256xf32>
    %111 = vector.broadcast %110 : vector<1x256xf32> to vector<16x256xf32>
    %112 = arith.mulf %109, %111 : vector<16x256xf32>
    %113 = vector.extract_strided_slice %4 {offsets = [0, 8], sizes = [16, 1], strides = [1, 1]} : vector<16x9xf32> to vector<16x1xf32>
    %114 = vector.broadcast %113 : vector<16x1xf32> to vector<16x256xf32>
    %115 = arith.mulf %112, %114 : vector<16x256xf32>
    %116 = arith.addf %108, %115 : vector<16x256xf32>
    %117 = vector.broadcast %3 : vector<16x1xf32> to vector<16x256xf32>
    %118 = arith.addf %116, %117 : vector<16x256xf32>
    %cst_35 = arith.constant 5.000000e-01 : f32
    %119 = vector.broadcast %cst_35 : f32 to vector<16x256xf32>
    %120 = arith.mulf %119, %118 : vector<16x256xf32>
    %cst_36 = arith.constant 0.707106769 : f32
    %121 = vector.broadcast %cst_36 : f32 to vector<16x256xf32>
    %122 = arith.mulf %118, %121 : vector<16x256xf32>
    %123 = math.absf %122 : vector<16x256xf32>
    %cst_37 = arith.constant 0.327591091 : f32
    %124 = vector.broadcast %cst_37 : f32 to vector<16x256xf32>
    %125 = arith.mulf %124, %123 : vector<16x256xf32>
    %cst_38 = arith.constant 1.000000e+00 : f32
    %126 = vector.broadcast %cst_38 : f32 to vector<16x256xf32>
    %127 = arith.addf %126, %125 : vector<16x256xf32>
    %128 = tpu.reciprocal %127 : vector<16x256xf32> -> vector<16x256xf32>
    %cst_39 = arith.constant 1.06140542 : f32
    %129 = vector.broadcast %cst_39 : f32 to vector<16x256xf32>
    %130 = arith.mulf %128, %129 : vector<16x256xf32>
    %cst_40 = arith.constant -1.45315206 : f32
    %131 = vector.broadcast %cst_40 : f32 to vector<16x256xf32>
    %132 = arith.addf %131, %130 : vector<16x256xf32>
    %133 = arith.mulf %128, %132 : vector<16x256xf32>
    %cst_41 = arith.constant 1.42141378 : f32
    %134 = vector.broadcast %cst_41 : f32 to vector<16x256xf32>
    %135 = arith.addf %134, %133 : vector<16x256xf32>
    %136 = arith.mulf %128, %135 : vector<16x256xf32>
    %cst_42 = arith.constant -0.284496725 : f32
    %137 = vector.broadcast %cst_42 : f32 to vector<16x256xf32>
    %138 = arith.addf %137, %136 : vector<16x256xf32>
    %139 = arith.mulf %128, %138 : vector<16x256xf32>
    %cst_43 = arith.constant 0.254829586 : f32
    %140 = vector.broadcast %cst_43 : f32 to vector<16x256xf32>
    %141 = arith.addf %140, %139 : vector<16x256xf32>
    %142 = arith.mulf %128, %141 : vector<16x256xf32>
    %cst_44 = arith.constant 0.000000e+00 : f32
    %143 = vector.broadcast %cst_44 : f32 to vector<16x256xf32>
    %144 = arith.subf %143, %123 : vector<16x256xf32>
    %145 = arith.mulf %144, %123 : vector<16x256xf32>
    %146 = math.exp %145 : vector<16x256xf32>
    %147 = arith.mulf %142, %146 : vector<16x256xf32>
    %cst_45 = arith.constant 1.000000e+00 : f32
    %148 = vector.broadcast %cst_45 : f32 to vector<16x256xf32>
    %149 = arith.subf %148, %147 : vector<16x256xf32>
    %cst_46 = arith.constant 0.000000e+00 : f32
    %150 = vector.broadcast %cst_46 : f32 to vector<16x256xf32>
    %151 = arith.cmpf oge, %122, %150 : vector<16x256xf32>
    %cst_47 = arith.constant 0.000000e+00 : f32
    %152 = vector.broadcast %cst_47 : f32 to vector<16x256xf32>
    %153 = arith.subf %152, %149 : vector<16x256xf32>
    %154 = arith.select %151, %149, %153 : vector<16x256xi1>, vector<16x256xf32>
    %cst_48 = arith.constant 1.000000e+00 : f32
    %155 = vector.broadcast %cst_48 : f32 to vector<16x256xf32>
    %156 = arith.addf %155, %154 : vector<16x256xf32>
    %157 = arith.mulf %120, %156 : vector<16x256xf32>
    %cst_49 = arith.constant dense<0.000000e+00> : vector<16xf32>
    %158 = vector.multi_reduction <add>, %157, %cst_49 [1] : vector<16x256xf32> to vector<16xf32>
    %159 = vector.shape_cast %158 : vector<16xf32> to vector<16x1xf32>
    %cst_50 = arith.constant 2.560000e+02 : f32
    %160 = vector.broadcast %cst_50 : f32 to vector<16x1xf32>
    %161 = arith.divf %159, %160 : vector<16x1xf32>
    %162 = vector.broadcast %161 : vector<16x1xf32> to vector<16x2xf32>
    %163 = arith.mulf %5, %162 : vector<16x2xf32>
    %cst_51 = arith.constant dense<0.000000e+00> : vector<2xf32>
    %164 = vector.multi_reduction <add>, %163, %cst_51 [0] : vector<16x2xf32> to vector<2xf32>
    %165 = vector.shape_cast %164 : vector<2xf32> to vector<1x2xf32>
    %cst_52 = arith.constant 5.000000e-01 : f32
    %166 = vector.broadcast %cst_52 : f32 to vector<1x2xf32>
    %167 = arith.mulf %166, %165 : vector<1x2xf32>
    %cst_53 = arith.constant 0.707106769 : f32
    %168 = vector.broadcast %cst_53 : f32 to vector<1x2xf32>
    %169 = arith.mulf %165, %168 : vector<1x2xf32>
    %170 = math.absf %169 : vector<1x2xf32>
    %cst_54 = arith.constant 0.327591091 : f32
    %171 = vector.broadcast %cst_54 : f32 to vector<1x2xf32>
    %172 = arith.mulf %171, %170 : vector<1x2xf32>
    %cst_55 = arith.constant 1.000000e+00 : f32
    %173 = vector.broadcast %cst_55 : f32 to vector<1x2xf32>
    %174 = arith.addf %173, %172 : vector<1x2xf32>
    %175 = tpu.reciprocal %174 : vector<1x2xf32> -> vector<1x2xf32>
    %cst_56 = arith.constant 1.06140542 : f32
    %176 = vector.broadcast %cst_56 : f32 to vector<1x2xf32>
    %177 = arith.mulf %175, %176 : vector<1x2xf32>
    %cst_57 = arith.constant -1.45315206 : f32
    %178 = vector.broadcast %cst_57 : f32 to vector<1x2xf32>
    %179 = arith.addf %178, %177 : vector<1x2xf32>
    %180 = arith.mulf %175, %179 : vector<1x2xf32>
    %cst_58 = arith.constant 1.42141378 : f32
    %181 = vector.broadcast %cst_58 : f32 to vector<1x2xf32>
    %182 = arith.addf %181, %180 : vector<1x2xf32>
    %183 = arith.mulf %175, %182 : vector<1x2xf32>
    %cst_59 = arith.constant -0.284496725 : f32
    %184 = vector.broadcast %cst_59 : f32 to vector<1x2xf32>
    %185 = arith.addf %184, %183 : vector<1x2xf32>
    %186 = arith.mulf %175, %185 : vector<1x2xf32>
    %cst_60 = arith.constant 0.254829586 : f32
    %187 = vector.broadcast %cst_60 : f32 to vector<1x2xf32>
    %188 = arith.addf %187, %186 : vector<1x2xf32>
    %189 = arith.mulf %175, %188 : vector<1x2xf32>
    %cst_61 = arith.constant 0.000000e+00 : f32
    %190 = vector.broadcast %cst_61 : f32 to vector<1x2xf32>
    %191 = arith.subf %190, %170 : vector<1x2xf32>
    %192 = arith.mulf %191, %170 : vector<1x2xf32>
    %193 = math.exp %192 : vector<1x2xf32>
    %194 = arith.mulf %189, %193 : vector<1x2xf32>
    %cst_62 = arith.constant 1.000000e+00 : f32
    %195 = vector.broadcast %cst_62 : f32 to vector<1x2xf32>
    %196 = arith.subf %195, %194 : vector<1x2xf32>
    %cst_63 = arith.constant 0.000000e+00 : f32
    %197 = vector.broadcast %cst_63 : f32 to vector<1x2xf32>
    %198 = arith.cmpf oge, %169, %197 : vector<1x2xf32>
    %cst_64 = arith.constant 0.000000e+00 : f32
    %199 = vector.broadcast %cst_64 : f32 to vector<1x2xf32>
    %200 = arith.subf %199, %196 : vector<1x2xf32>
    %201 = arith.select %198, %196, %200 : vector<1x2xi1>, vector<1x2xf32>
    %cst_65 = arith.constant 1.000000e+00 : f32
    %202 = vector.broadcast %cst_65 : f32 to vector<1x2xf32>
    %203 = arith.addf %202, %201 : vector<1x2xf32>
    %204 = arith.mulf %167, %203 : vector<1x2xf32>
    %205 = vector.broadcast %204 : vector<1x2xf32> to vector<16x2xf32>
    %206 = arith.mulf %6, %205 : vector<16x2xf32>
    %cst_66 = arith.constant dense<0.000000e+00> : vector<16xf32>
    %207 = vector.multi_reduction <add>, %206, %cst_66 [1] : vector<16x2xf32> to vector<16xf32>
    %208 = vector.shape_cast %207 : vector<16xf32> to vector<16x1xf32>
    %cst_67 = arith.constant 5.000000e-01 : f32
    %209 = vector.broadcast %cst_67 : f32 to vector<16x1xf32>
    %210 = arith.mulf %209, %208 : vector<16x1xf32>
    %211 = math.tanh %210 : vector<16x1xf32>
    %cst_68 = arith.constant 1.000000e+00 : f32
    %212 = vector.broadcast %cst_68 : f32 to vector<16x1xf32>
    %213 = arith.addf %212, %211 : vector<16x1xf32>
    %cst_69 = arith.constant 5.000000e-01 : f32
    %214 = vector.broadcast %cst_69 : f32 to vector<16x1xf32>
    %215 = arith.mulf %214, %213 : vector<16x1xf32>
    %216 = vector.broadcast %215 : vector<16x1xf32> to vector<16x256xf32>
    %217 = arith.mulf %157, %216 : vector<16x256xf32>
    %c0_70 = arith.constant 0 : index
    %c0_71 = arith.constant 0 : index
    %218 = vector.load %arg4[%c0_70, %c0_71] : memref<8x16xf32, #tpu.memory_space<vmem>>, vector<8x16xf32>
    %cst_72 = arith.constant dense<0.000000e+00> : vector<8x256xf32>
    %219 = tpu.matmul %218, %217, %cst_72 {dimension_numbers = #tpu.dot_dimension_numbers<[1], [0], [0], [1], [0, 0, 1, 1], [], []>} : vector<8x16xf32>, vector<16x256xf32>, vector<8x256xf32> -> vector<8x256xf32>
    %c0_73 = arith.constant 0 : index
    %c0_74 = arith.constant 0 : index
    %220 = vector.load %arg5[%c0_73, %c0_74] : memref<8x1xf32, #tpu.memory_space<vmem>>, vector<8x1xf32>
    %221 = vector.broadcast %220 : vector<8x1xf32> to vector<8x256xf32>
    %222 = arith.addf %219, %221 : vector<8x256xf32>
    %223 = arith.addf %222, %1 : vector<8x256xf32>
    %c0_75 = arith.constant 0 : index
    %c0_76 = arith.constant 0 : index
    %c0_77 = arith.constant 0 : index
    %224 = vector.load %arg7[%c0_75, %c0_76, %c0_77] : memref<1x8x256xf32, #tpu.memory_space<vmem>>, vector<1x8x256xf32>
    %225 = vector.shape_cast %224 : vector<1x8x256xf32> to vector<8x256xf32>
    %226 = vector.shape_cast %223 : vector<8x256xf32> to vector<1x8x256xf32>
    tpu.vector_store %arg7[%c0_75, %c0_76, %c0_77], %226 {strides = array<i32>} : memref<1x8x256xf32, #tpu.memory_space<vmem>>, vector<1x8x256xf32>,
    return
  }
  func.func @transform_0(%arg0: i32) -> (i32, i32, i32) {
    %c0_i32 = arith.constant 0 : i32
    %c0_i32_0 = arith.constant 0 : i32
    %c0_i32_1 = arith.constant 0 : i32
    return %arg0, %c0_i32, %c0_i32_0 : i32, i32, i32
  }
  func.func @transform_1(%arg0: i32) -> (i32, i32) {
    %c0_i32 = arith.constant 0 : i32
    %c0_i32_0 = arith.constant 0 : i32
    %c0_i32_1 = arith.constant 0 : i32
    return %c0_i32, %c0_i32_0 : i32, i32
  }
  func.func @transform_2(%arg0: i32) -> (i32, i32) {
    %c0_i32 = arith.constant 0 : i32
    %c0_i32_0 = arith.constant 0 : i32
    %c0_i32_1 = arith.constant 0 : i32
    return %c0_i32, %c0_i32_0 : i32, i32
  }
  func.func @transform_3(%arg0: i32) -> (i32, i32) {
    %c0_i32 = arith.constant 0 : i32
    %c0_i32_0 = arith.constant 0 : i32
    %c0_i32_1 = arith.constant 0 : i32
    return %c0_i32, %c0_i32_0 : i32, i32
  }
  func.func @transform_4(%arg0: i32) -> (i32, i32) {
    %c0_i32 = arith.constant 0 : i32
    %c0_i32_0 = arith.constant 0 : i32
    %c0_i32_1 = arith.constant 0 : i32
    return %c0_i32, %c0_i32_0 : i32, i32
  }
  func.func @transform_5(%arg0: i32) -> (i32, i32) {
    %c0_i32 = arith.constant 0 : i32
    %c0_i32_0 = arith.constant 0 : i32
    %c0_i32_1 = arith.constant 0 : i32
    return %c0_i32, %c0_i32_0 : i32, i32
  }
  func.func @transform_6(%arg0: i32) -> (i32, i32, i32) {
    %c0_i32 = arith.constant 0 : i32
    %c0_i32_0 = arith.constant 0 : i32
    %c0_i32_1 = arith.constant 0 : i32
    return %arg0, %c0_i32, %c0_i32_0 : i32, i32, i32
  }
}

</mosaic_0001>

<llo_original>
// kernel: mbconv_forward.1
$region0: #{mbconv_forward.1}
  #allocation0 [shape = 'u32[]', space=smem, size = 0x4, offset = 0x4, fixed_abs, tag = 'smem constant byte address 0x4 - core index']
  #allocation1 [shape = 'u32[144,128]{1,0:T(1,128)}', space=vmem, size = 0x12000, scoped, tag = 'internal scratch']
  %s0 = inlined_call_operand.vmem [shape: f32[2,8,256], index: 0, kind: input, shape index: {}]
  %s1 = inlined_call_operand.vmem [shape: f32[16,8], index: 1, kind: input, shape index: {}]
  %s2 = inlined_call_operand.vmem [shape: f32[16,15], index: 2, kind: input, shape index: {}]
  %s3 = inlined_call_operand.vmem [shape: f32[8,16], index: 3, kind: input, shape index: {}]
  %s4 = inlined_call_operand.vmem [shape: f32[8,1], index: 4, kind: input, shape index: {}]
  %s5 = inlined_call_operand.vmem [shape: f32[9,256], index: 5, kind: input, shape index: {}]
  %s6 = inlined_call_operand.vmem [shape: f32[2,8,256], index: 6, kind: output, shape index: {}]
  %s7 = sld [smem:[#allocation0]]
  $region57: #{mbconv_forward.1} parent=0
    _
  %s9 = ssub.s32 1, %s7
  %s10 = scalar_select 0, %s9, %s7
  loop: start=0, step=1, limit=4
  $region2: #{mbconv_forward.1} parent=0 // loop_pre_header
    _
  $region3: #{mbconv_forward.1} parent=0 // loop_header
    %s12 = sphi 0, %s16
    %p13 = scmp.ge.s32.totalorder %s12, 4
    %s22 = sphi 0, %s24
    %s25 = sphi 0, %s22
    %s26 = sphi 0, %s25
    %s42 = sphi 0, %s26
    %s46 = sphi 0, %s46
    %s48 = sphi 0, %s46
    %s49 = sphi 0, %s48
    %s63 = sphi 0, %s49
    %s67 = sphi 0, %s67
    %s69 = sphi 0, %s67
    %s70 = sphi 0, %s69
    %s84 = sphi 0, %s70
    %s88 = sphi 0, %s88
    %s90 = sphi 0, %s88
    %s91 = sphi 0, %s90
    %s105 = sphi 0, %s91
    %s109 = sphi 0, %s109
    %s111 = sphi 0, %s109
    %s112 = sphi 0, %s111
    %s126 = sphi 0, %s112
    %s130 = sphi 0, %s130
    %s132 = sphi 0, %s130
    %s133 = sphi 0, %s132
    %s147 = sphi 0, %s133
    %s153 = sphi 0, %s155
    %s156 = sphi 0, %s153
    %s157 = sphi 0, %s156
    %s173 = sphi 0, %s157
  $region4: #{mbconv_forward.1} parent=0 // loop_header_branch
    %15 = sbr.rel (%p13) target = $region8
  $region5: #{mbconv_forward.1} parent=0 // loop_body
    %s17 = ssub.s32 %s12, 1
    %s18 = ssub.s32 %s12, 2
    %s19 = sadd.s32 %s12, 1
    %s20 = ssub.s32 %s12, %s19
    %p21 = scmp.eq.s32.totalorder %s20, 0
    %s23 = sadd.s32 %s22, 1
    %s24 = scalar_select %p21, %s22, %s23
    %p27 = pneg %p21
    %p28 = scmp.eq.s32.totalorder %s12, 1
    %p29 = por %p27, %p28
    %p30 = scmp.ne.s32.totalorder %s22, %s25
    %p31 = scmp.eq.s32.totalorder %s12, 0
    %p32 = por %p30, %p31
    %p33 = scmp.ne.s32.totalorder %s22, %s25
    %p34 = scmp.eq.s32.totalorder %s17, 1
    %p35 = por %p33, %p34
    %p36 = scmp.ne.s32.totalorder %s25, %s26
    %p37 = scmp.eq.s32.totalorder %s17, 0
    %p38 = por %p36, %p37
    %p39 = scmp.ne.s32.totalorder %s25, %s26
    %p40 = scmp.eq.s32.totalorder %s18, 1
    %p41 = por %p39, %p40
    %p43 = scmp.ne.s32.totalorder %s26, %s42
    %p44 = scmp.eq.s32.totalorder %s18, 0
    %p45 = por %p43, %p44
    %s47 = sadd.s32 %s46, 1
    %p50 = scmp.eq.s32.totalorder %s12, 1
    %p51 = scmp.ne.s32.totalorder %s46, %s48
    %p52 = scmp.eq.s32.totalorder %s12, 0
    %p53 = por %p51, %p52
    %p54 = scmp.ne.s32.totalorder %s46, %s48
    %p55 = scmp.eq.s32.totalorder %s17, 1
    %p56 = por %p54, %p55
    %p57 = scmp.ne.s32.totalorder %s48, %s49
    %p58 = scmp.eq.s32.totalorder %s17, 0
    %p59 = por %p57, %p58
    %p60 = scmp.ne.s32.totalorder %s48, %s49
    %p61 = scmp.eq.s32.totalorder %s18, 1
    %p62 = por %p60, %p61
    %p64 = scmp.ne.s32.totalorder %s49, %s63
    %p65 = scmp.eq.s32.totalorder %s18, 0
    %p66 = por %p64, %p65
    %s68 = sadd.s32 %s67, 1
    %p71 = scmp.eq.s32.totalorder %s12, 1
    %p72 = scmp.ne.s32.totalorder %s67, %s69
    %p73 = scmp.eq.s32.totalorder %s12, 0
    %p74 = por %p72, %p73
    %p75 = scmp.ne.s32.totalorder %s67, %s69
    %p76 = scmp.eq.s32.totalorder %s17, 1
    %p77 = por %p75, %p76
    %p78 = scmp.ne.s32.totalorder %s69, %s70
    %p79 = scmp.eq.s32.totalorder %s17, 0
    %p80 = por %p78, %p79
    %p81 = scmp.ne.s32.totalorder %s69, %s70
    %p82 = scmp.eq.s32.totalorder %s18, 1
    %p83 = por %p81, %p82
    %p85 = scmp.ne.s32.totalorder %s70, %s84
    %p86 = scmp.eq.s32.totalorder %s18, 0
    %p87 = por %p85, %p86
    %s89 = sadd.s32 %s88, 1
    %p92 = scmp.eq.s32.totalorder %s12, 1
    %p93 = scmp.ne.s32.totalorder %s88, %s90
    %p94 = scmp.eq.s32.totalorder %s12, 0
    %p95 = por %p93, %p94
    %p96 = scmp.ne.s32.totalorder %s88, %s90
    %p97 = scmp.eq.s32.totalorder %s17, 1
    %p98 = por %p96, %p97
    %p99 = scmp.ne.s32.totalorder %s90, %s91
    %p100 = scmp.eq.s32.totalorder %s17, 0
    %p101 = por %p99, %p100
    %p102 = scmp.ne.s32.totalorder %s90, %s91
    %p103 = scmp.eq.s32.totalorder %s18, 1
    %p104 = por %p102, %p103
    %p106 = scmp.ne.s32.totalorder %s91, %s105
    %p107 = scmp.eq.s32.totalorder %s18, 0
    %p108 = por %p106, %p107
    %s110 = sadd.s32 %s109, 1
    %p113 = scmp.eq.s32.totalorder %s12, 1
    %p114 = scmp.ne.s32.totalorder %s109, %s111
    %p115 = scmp.eq.s32.totalorder %s12, 0
    %p116 = por %p114, %p115
    %p117 = scmp.ne.s32.totalorder %s109, %s111
    %p118 = scmp.eq.s32.totalorder %s17, 1
    %p119 = por %p117, %p118
    %p120 = scmp.ne.s32.totalorder %s111, %s112
    %p121 = scmp.eq.s32.totalorder %s17, 0
    %p122 = por %p120, %p121
    %p123 = scmp.ne.s32.totalorder %s111, %s112
    %p124 = scmp.eq.s32.totalorder %s18, 1
    %p125 = por %p123, %p124
    %p127 = scmp.ne.s32.totalorder %s112, %s126
    %p128 = scmp.eq.s32.totalorder %s18, 0
    %p129 = por %p127, %p128
    %s131 = sadd.s32 %s130, 1
    %p134 = scmp.eq.s32.totalorder %s12, 1
    %p135 = scmp.ne.s32.totalorder %s130, %s132
    %p136 = scmp.eq.s32.totalorder %s12, 0
    %p137 = por %p135, %p136
    %p138 = scmp.ne.s32.totalorder %s130, %s132
    %p139 = scmp.eq.s32.totalorder %s17, 1
    %p140 = por %p138, %p139
    %p141 = scmp.ne.s32.totalorder %s132, %s133
    %p142 = scmp.eq.s32.totalorder %s17, 0
    %p143 = por %p141, %p142
    %p144 = scmp.ne.s32.totalorder %s132, %s133
    %p145 = scmp.eq.s32.totalorder %s18, 1
    %p146 = por %p144, %p145
    %p148 = scmp.ne.s32.totalorder %s133, %s147
    %p149 = scmp.eq.s32.totalorder %s18, 0
    %p150 = por %p148, %p149
    %s151 = ssub.s32 %s12, %s19
    %p152 = scmp.eq.s32.totalorder %s151, 0
    %s154 = sadd.s32 %s153, 1
    %s155 = scalar_select %p152, %s153, %s154
    %p158 = pneg %p152
    %p159 = scmp.eq.s32.totalorder %s12, 1
    %p160 = por %p158, %p159
    %p161 = scmp.ne.s32.totalorder %s153, %s156
    %p162 = scmp.eq.s32.totalorder %s12, 0
    %p163 = por %p161, %p162
    %p164 = scmp.ne.s32.totalorder %s153, %s156
    %p165 = scmp.eq.s32.totalorder %s17, 1
    %p166 = por %p164, %p165
    %p167 = scmp.ne.s32.totalorder %s156, %s157
    %p168 = scmp.eq.s32.totalorder %s17, 0
    %p169 = por %p167, %p168
    %p170 = scmp.ne.s32.totalorder %s156, %s157
    %p171 = scmp.eq.s32.totalorder %s18, 1
    %p172 = por %p170, %p171
    %p174 = scmp.ne.s32.totalorder %s157, %s173
    %p175 = scmp.eq.s32.totalorder %s18, 0
    %p176 = por %p174, %p175
    %p177 = scmp.le.s32.totalorder 1, %s12
    %p178 = scmp.lt.s32.totalorder %s12, 3
    %p179 = pnand %p177, %p178
    %p180 = pneg %p179
    // Predicated region
    $region9: #{mbconv_forward.1} parent=5 // pred_check
      _
    $region10: #{mbconv_forward.1} parent=5 // pred_check_branch
      %182 = sbr.rel (%p179) target = $region12
    $region11: #{mbconv_forward.1} parent=5 // pred_region
      %s183 = ssub.s32 %s12, 1
      // Predicated region
      $region13: #{mbconv_forward.1} parent=11 // pred_check
        %p184 = pneg %p59
      $region14: #{mbconv_forward.1} parent=11 // pred_check_branch
        %186 = sbr.rel (%p184) target = $region16
      $region15: #{mbconv_forward.1} parent=11 // pred_region
        _
      $region16: #{mbconv_forward.1} parent=11 // pred_fallthru
        _
      // Predicated region
      $region17: #{mbconv_forward.1} parent=11 // pred_check
        %p187 = pneg %p80
      $region18: #{mbconv_forward.1} parent=11 // pred_check_branch
        %189 = sbr.rel (%p187) target = $region20
      $region19: #{mbconv_forward.1} parent=11 // pred_region
        _
      $region20: #{mbconv_forward.1} parent=11 // pred_fallthru
        _
      // Predicated region
      $region21: #{mbconv_forward.1} parent=11 // pred_check
        %p190 = pneg %p101
      $region22: #{mbconv_forward.1} parent=11 // pred_check_branch
        %192 = sbr.rel (%p190) target = $region24
      $region23: #{mbconv_forward.1} parent=11 // pred_region
        _
      $region24: #{mbconv_forward.1} parent=11 // pred_fallthru
        _
      // Predicated region
      $region25: #{mbconv_forward.1} parent=11 // pred_check
        %p193 = pneg %p122
      $region26: #{mbconv_forward.1} parent=11 // pred_check_branch
        %195 = sbr.rel (%p193) target = $region28
      $region27: #{mbconv_forward.1} parent=11 // pred_region
        _
      $region28: #{mbconv_forward.1} parent=11 // pred_fallthru
        _
      // Predicated region
      $region29: #{mbconv_forward.1} parent=11 // pred_check
        %p196 = pneg %p143
      $region30: #{mbconv_forward.1} parent=11 // pred_check_branch
        %198 = sbr.rel (%p196) target = $region32
      $region31: #{mbconv_forward.1} parent=11 // pred_region
        _
      $region32: #{mbconv_forward.1} parent=11 // pred_fallthru
        _
    $region12: #{mbconv_forward.1} parent=5 // pred_fallthru
      _
    %p199 = scmp.lt.s32.totalorder %s12, 2
    // Predicated region
    $region33: #{mbconv_forward.1} parent=5 // pred_check
      %p200 = pneg %p199
    $region34: #{mbconv_forward.1} parent=5 // pred_check_branch
      %202 = sbr.rel (%p200) target = $region36
    $region35: #{mbconv_forward.1} parent=5 // pred_region
      // Predicated region
      $region37: #{mbconv_forward.1} parent=35 // pred_check
        %p203 = pneg %p32
      $region38: #{mbconv_forward.1} parent=35 // pred_check_branch
        %205 = sbr.rel (%p203) target = $region40
      $region39: #{mbconv_forward.1} parent=35 // pred_region
        %p206 = scmp.lt.s32.totalorder %s12, 1
        %s207 = scalar_select %p206, %s12, 1
        %s208 = smul.addr %s207, 2
        %s209 = smul.addr %s208, 8
        %s210 = scalar_lea.vmem %s0, %s209
      $region40: #{mbconv_forward.1} parent=35 // pred_fallthru
        _
    $region36: #{mbconv_forward.1} parent=5 // pred_fallthru
      _
    %p211 = scmp.le.s32.totalorder 1, %s12
    %p212 = scmp.lt.s32.totalorder %s12, 3
    %p213 = pnand %p211, %p212
    %p214 = pneg %p213
    // Predicated region
    $region41: #{mbconv_forward.1} parent=5 // pred_check
      _
    $region42: #{mbconv_forward.1} parent=5 // pred_check_branch
      %216 = sbr.rel (%p213) target = $region44
    $region43: #{mbconv_forward.1} parent=5 // pred_region
      %s217 = ssub.s32 %s12, 1
      %p218 = scmp.lt.s32.totalorder %s17, 1
      %s219 = scalar_select %p218, %s17, 1
      %s220 = smul.addr %s219, 2
      %s221 = smul.addr %s220, 8
      %s222 = scalar_lea.vmem %s0, %s221
      %p223 = pneg %p38
      %p224 = pneg %p35
      %p225 = pneg %p59
      %p226 = pneg %p56
      %p227 = pneg %p80
      %p228 = pneg %p77
      %p229 = pneg %p101
      %p230 = pneg %p98
      %p231 = pneg %p122
      %p232 = pneg %p119
      %p233 = pneg %p143
      %p234 = pneg %p140
      %p235 = pneg %p169
      %p236 = pneg %p166
      %p237 = scmp.lt.s32.totalorder %s17, 1
      %s238 = scalar_select %p237, %s17, 1
      %s239 = smul.addr %s238, 2
      %s240 = smul.addr %s239, 8
      %s241 = scalar_lea.vmem %s6, %s240
      %p242 = scmp.lt.s32.totalorder %s17, 1
      %s243 = scalar_select %p242, %s17, 1
      %s244 = smul.addr %s243, 2
      %s245 = smul.addr %s244, 8
      %s246 = scalar_lea.vmem %s0, %s245
      %p247 = scmp.lt.s32.totalorder %s17, 1
      %s248 = scalar_select %p247, %s17, 1
      %s249 = smul.addr %s248, 2
      %s250 = smul.addr %s249, 8
      %s251 = scalar_lea.vmem %s6, %s250
      %v252 = vld [vmem:[%s246] sm:$0xff]
      %v253 = vld [vmem:[%s246 + $0x8] sm:$0xff]
      %v254 = vld [vmem:[%s2] sm:$0xff]
      %v255 = vld [vmem:[%s2 + $0x8] sm:$0xff]
      %v256 = vld [vmem:[%s1] sm:$0xff]
      %v257 = vld [vmem:[%s1 + $0x8] sm:$0xff]
      %259 = vset.pattern.permute.xlu0 0
      %260 = vperm.xlu0 %259, %v254
      %v261 = vpop.permute.xlu0 %260
      %264 = vset.pattern.permute.xlu0 0
      %265 = vperm.xlu0 %264, %v255
      %v266 = vpop.permute.xlu0 %265
      %vm268 = vcmask 64512
      %v270 = vsel %vm268, %v256, 0
      %v273 = vsel %vm268, %v257, 0
      %275 = vmatprep.subr.mxu0 0.0
      %276 = vmatpush1.msra.mxu0 0.0
      %277 = vmatprep.subr.mxu0 0.0
      %278 = vmatpush1.msra.mxu0 0.0
      %279 = vmatprep.subr.mxu0 0.0
      %280 = vmatpush1.msra.mxu0 0.0
      %281 = vmatprep.subr.mxu0 0.0
      %282 = vmatpush1.msra.mxu0 0.0
      %283 = vmatprep.subr.mxu0 0.0
      %284 = vmatpush1.msra.mxu0 0.0
      %285 = vmatprep.subr.mxu0 0.0
      %286 = vmatpush1.msra.mxu0 0.0
      %287 = vmatprep.subr.mxu0 0.0
      %288 = vmatpush1.msra.mxu0 0.0
      %289 = vmatprep.subr.mxu0 0.0
      %290 = vmatpush1.msra.mxu0 0.0
      %291 = vmatprep.subr.mxu0 0.0
      %292 = vmatpush1.msra.mxu0 0.0
      %293 = vmatprep.subr.mxu0 0.0
      %294 = vmatpush1.msra.mxu0 0.0
      %295 = vmatprep.subr.mxu0 0.0
      %296 = vmatpush1.msra.mxu0 0.0
      %297 = vmatprep.subr.mxu0 0.0
      %298 = vmatpush1.msra.mxu0 0.0
      %299 = vmatprep.subr.mxu0 0.0
      %300 = vmatpush1.msra.mxu0 0.0
      %301 = vmatprep.subr.mxu0 0.0
      %302 = vmatpush1.msra.mxu0 0.0
      %303 = vmatprep.subr.mxu0 0.0
      %304 = vmatpush1.msra.mxu0 0.0
      %305 = vmatprep.subr.mxu0 %v253
      %306 = vmatpush1.msra.mxu0 %v252
      %307 = vmatprep.subr.mxu0 0.0
      %308 = vmatpush2.msra.mxu0 0.0
      %309 = vmatprep.subr.mxu0 0.0
      %310 = vmatpush2.msra.mxu0 0.0
      %311 = vmatprep.subr.mxu0 0.0
      %312 = vmatpush2.msra.mxu0 0.0
      %313 = vmatprep.subr.mxu0 0.0
      %314 = vmatpush2.msra.mxu0 0.0
      %315 = vmatprep.subr.mxu0 0.0
      %316 = vmatpush2.msra.mxu0 0.0
      %317 = vmatprep.subr.mxu0 0.0
      %318 = vmatpush2.msra.mxu0 0.0
      %319 = vmatprep.subr.mxu0 0.0
      %320 = vmatpush2.msra.mxu0 0.0
      %321 = vmatprep.subr.mxu0 0.0
      %322 = vmatpush2.msra.mxu0 0.0
      %323 = vmatprep.subr.mxu0 0.0
      %324 = vmatpush2.msra.mxu0 0.0
      %325 = vmatprep.subr.mxu0 0.0
      %326 = vmatpush2.msra.mxu0 0.0
      %327 = vmatprep.subr.mxu0 0.0
      %328 = vmatpush2.msra.mxu0 0.0
      %329 = vmatprep.subr.mxu0 0.0
      %330 = vmatpush2.msra.mxu0 0.0
      %331 = vmatprep.subr.mxu0 0.0
      %332 = vmatpush2.msra.mxu0 0.0
      %333 = vmatprep.subr.mxu0 0.0
      %334 = vmatpush2.msra.mxu0 0.0
      %335 = vmatprep.subr.mxu0 0.0
      %336 = vmatpush2.msra.mxu0 0.0
      %337 = vmatprep.subr.mxu0 0.0
      %338 = vmatpush2.msra.mxu0 0.0
      %339 = vmatprep.mubr.f32.mxu0 0.0
      %340 = vmatmul.mubr.f32.gmra.mxu0 %v270
      %v341 = vpop.f32.mrf.mxu0
      %v342 = vadd.f32 %v261, %v341
      %v343 = vpop.f32.mrf.mxu0
      %v344 = vadd.f32 %v261, %v343
      %345 = vmatprep.mubr.f32.mxu0 0.0
      %346 = vmatmul.mubr.f32.gmra.mxu0 %v273
      %v347 = vpop.f32.mrf.mxu0
      %v348 = vadd.f32 %v266, %v347
      %v349 = vpop.f32.mrf.mxu0
      %v350 = vadd.f32 %v266, %v349
      %351 = vdwg.mxu0
      %v352 = vmul.f32 %v342, 0.5
      %v353 = vmul.f32 %v344, 0.5
      %v354 = vmul.f32 %v348, 0.5
      %v355 = vmul.f32 %v350, 0.5
      %v356 = vmul.f32 %v342, 0.70710677
      %v357 = vmul.f32 %v344, 0.70710677
      %v358 = vmul.f32 %v348, 0.70710677
      %v359 = vmul.f32 %v350, 0.70710677
      %v360 = vand.u32 2147483647, %v356
      %v361 = vand.u32 2147483647, %v357
      %v362 = vand.u32 2147483647, %v358
      %v363 = vand.u32 2147483647, %v359
      %v364 = vmul.f32 %v360, 0.3275911
      %v365 = vmul.f32 %v361, 0.3275911
      %v366 = vmul.f32 %v362, 0.3275911
      %v367 = vmul.f32 %v363, 0.3275911
      %v368 = vadd.f32 %v364, 1.0
      %v369 = vadd.f32 %v365, 1.0
      %v370 = vadd.f32 %v366, 1.0
      %v371 = vadd.f32 %v367, 1.0
      %v372 = vrcp.pop %v368
      %v373 = vrcp.pop %v369
      %v374 = vrcp.pop %v370
      %v375 = vrcp.pop %v371
      %v376 = vmul.f32 %v372, 1.0614054
      %v377 = vmul.f32 %v373, 1.0614054
      %v378 = vmul.f32 %v374, 1.0614054
      %v379 = vmul.f32 %v375, 1.0614054
      %v380 = vadd.f32 %v376, -1.4531521
      %v381 = vadd.f32 %v377, -1.4531521
      %v382 = vadd.f32 %v378, -1.4531521
      %v383 = vadd.f32 %v379, -1.4531521
      %v384 = vmul.f32 %v372, %v380
      %v385 = vmul.f32 %v373, %v381
      %v386 = vmul.f32 %v374, %v382
      %v387 = vmul.f32 %v375, %v383
      %v388 = vadd.f32 %v384, 1.4214138
      %v389 = vadd.f32 %v385, 1.4214138
      %v390 = vadd.f32 %v386, 1.4214138
      %v391 = vadd.f32 %v387, 1.4214138
      %v392 = vmul.f32 %v372, %v388
      %v393 = vmul.f32 %v373, %v389
      %v394 = vmul.f32 %v374, %v390
      %v395 = vmul.f32 %v375, %v391
      %v396 = vadd.f32 %v392, -0.28449672
      %v397 = vadd.f32 %v393, -0.28449672
      %v398 = vadd.f32 %v394, -0.28449672
      %v399 = vadd.f32 %v395, -0.28449672
      %v400 = vmul.f32 %v372, %v396
      %v401 = vmul.f32 %v373, %v397
      %v402 = vmul.f32 %v374, %v398
      %v403 = vmul.f32 %v375, %v399
      %v404 = vadd.f32 %v400, 0.2548296
      %v405 = vadd.f32 %v401, 0.2548296
      %v406 = vadd.f32 %v402, 0.2548296
      %v407 = vadd.f32 %v403, 0.2548296
      %v408 = vmul.f32 %v372, %v404
      %v409 = vmul.f32 %v373, %v405
      %v410 = vmul.f32 %v374, %v406
      %v411 = vmul.f32 %v375, %v407
      %v412 = vsub.f32 0.0, %v360
      %v413 = vsub.f32 0.0, %v361
      %v414 = vsub.f32 0.0, %v362
      %v415 = vsub.f32 0.0, %v363
      %v416 = vmul.f32 %v412, %v360
      %v417 = vmul.f32 %v413, %v361
      %v418 = vmul.f32 %v414, %v362
      %v419 = vmul.f32 %v415, %v363
      %v420 = vmul.f32 %v416, 1.442695
      %v421 = vpow.pop %v420
      %v422 = vmul.f32 %v417, 1.442695
      %v423 = vpow.pop %v422
      %v424 = vmul.f32 %v418, 1.442695
      %v425 = vpow.pop %v424
      %v426 = vmul.f32 %v419, 1.442695
      %v427 = vpow.pop %v426
      %v428 = vmul.f32 %v408, %v421
      %v429 = vmul.f32 %v409, %v423
      %v430 = vmul.f32 %v410, %v425
      %v431 = vmul.f32 %v411, %v427
      %v432 = vsub.f32 1.0, %v428
      %v433 = vsub.f32 1.0, %v429
      %v434 = vsub.f32 1.0, %v430
      %v435 = vsub.f32 1.0, %v431
      %vm436 = vcmp.ge.f32.partialorder %v356, 0.0
      %vm437 = vcmp.ge.f32.partialorder %v357, 0.0
      %vm438 = vcmp.ge.f32.partialorder %v358, 0.0
      %vm439 = vcmp.ge.f32.partialorder %v359, 0.0
      %v440 = vsub.f32 0.0, %v432
      %v441 = vsub.f32 0.0, %v433
      %v442 = vsub.f32 0.0, %v434
      %v443 = vsub.f32 0.0, %v435
      %v444 = vsel %vm436, %v432, %v440
      %v445 = vsel %vm437, %v433, %v441
      %v446 = vsel %vm438, %v434, %v442
      %v447 = vsel %vm439, %v435, %v443
      %v448 = vadd.f32 %v444, 1.0
      %v449 = vadd.f32 %v445, 1.0
      %v450 = vadd.f32 %v446, 1.0
      %v451 = vadd.f32 %v447, 1.0
      %v452 = vmul.f32 %v352, %v448
      %v453 = vmul.f32 %v353, %v449
      %v454 = vmul.f32 %v354, %v450
      %v455 = vmul.f32 %v355, %v451
      %456 = vset.pattern.permute.xlu0 6
      %457 = vperm.xlu0 %456, %v254
      %v458 = vpop.permute.xlu0 %457
      %460 = vset.pattern.permute.xlu0 6
      %461 = vperm.xlu0 %460, %v255
      %v462 = vpop.permute.xlu0 %461
      %v464 = vmul.f32 %v452, %v458
      %v465 = vmul.f32 %v453, %v458
      %v466 = vmul.f32 %v454, %v462
      %v467 = vmul.f32 %v455, %v462
      %468 = vrot.lane.b32.xlu0 %v452, 17
      %v469 = vpop.permute.xlu0 %468
      %470 = vrot.lane.b32.xlu0 %v454, 17
      %v471 = vpop.permute.xlu0 %470
      %472 = vrot.lane.b32.xlu0 %v453, 17
      %v473 = vpop.permute.xlu0 %472
      %474 = vrot.lane.b32.xlu0 %v455, 17
      %v475 = vpop.permute.xlu0 %474
      %v476 = vlaneseq
      %v477 = vand.u32 %v476, 127
      %vm478 = vcmp.lt.s32.totalorder %v477, 17
      %v479 = vsel %vm478, %v469, %v473
      %v480 = vsel %vm478, %v471, %v475
      %v481 = vsel %vm478, %v473, %v469
      %v482 = vsel %vm478, %v475, %v471
      %v483 = vld [vmem:[%s5] ss:$8 sm:$0x3]
      %v485 = vlaneseq
      %v486 = vshrl.u32 %v485, 7
      %v487 = vsub.s32 0, %v486
      %v488 = vrot.slane %v483, %v487
      %v489 = vlaneseq
      %v490 = vshrl.u32 %v489, 7
      %v491 = vsub.s32 1, %v490
      %v492 = vrot.slane %v483, %v491
      %v495 = vmul.f32 %v481, %v488
      %v496 = vmul.f32 %v479, %v492
      %v497 = vmul.f32 %v482, %v488
      %v498 = vmul.f32 %v480, %v492
      %499 = vset.pattern.permute.xlu0 2
      %500 = vperm.xlu0 %499, %v254
      %v501 = vpop.permute.xlu0 %500
      %503 = vset.pattern.permute.xlu0 2
      %504 = vperm.xlu0 %503, %v255
      %v505 = vpop.permute.xlu0 %504
      %v507 = vmul.f32 %v495, %v501
      %v508 = vmul.f32 %v496, %v501
      %v509 = vmul.f32 %v497, %v505
      %v510 = vmul.f32 %v498, %v505
      %v511 = vadd.f32 %v464, %v507
      %v512 = vadd.f32 %v465, %v508
      %v513 = vadd.f32 %v466, %v509
      %v514 = vadd.f32 %v467, %v510
      %515 = vrot.lane.b32.xlu0 %v452, 16
      %v516 = vpop.permute.xlu0 %515
      %517 = vrot.lane.b32.xlu0 %v454, 16
      %v518 = vpop.permute.xlu0 %517
      %519 = vrot.lane.b32.xlu0 %v453, 16
      %v520 = vpop.permute.xlu0 %519
      %521 = vrot.lane.b32.xlu0 %v455, 16
      %v522 = vpop.permute.xlu0 %521
      %vm523 = vcmp.lt.s32.totalorder %v477, 16
      %v524 = vsel %vm523, %v516, %v520
      %v525 = vsel %vm523, %v518, %v522
      %v526 = vsel %vm523, %v520, %v516
      %v527 = vsel %vm523, %v522, %v518
      %s528 = scalar_lea.vmem %s5, 1
      %v529 = vld [vmem:[%s528] ss:$8 sm:$0x3]
      %v531 = vlaneseq
      %v532 = vshrl.u32 %v531, 7
      %v533 = vsub.s32 0, %v532
      %v534 = vrot.slane %v529, %v533
      %v535 = vlaneseq
      %v536 = vshrl.u32 %v535, 7
      %v537 = vsub.s32 1, %v536
      %v538 = vrot.slane %v529, %v537
      %v541 = vmul.f32 %v526, %v534
      %v542 = vmul.f32 %v524, %v538
      %v543 = vmul.f32 %v527, %v534
      %v544 = vmul.f32 %v525, %v538
      %545 = vset.pattern.permute.xlu0 3
      %546 = vperm.xlu0 %545, %v254
      %v547 = vpop.permute.xlu0 %546
      %549 = vset.pattern.permute.xlu0 3
      %550 = vperm.xlu0 %549, %v255
      %v551 = vpop.permute.xlu0 %550
      %v553 = vmul.f32 %v541, %v547
      %v554 = vmul.f32 %v542, %v547
      %v555 = vmul.f32 %v543, %v551
      %v556 = vmul.f32 %v544, %v551
      %v557 = vadd.f32 %v511, %v553
      %v558 = vadd.f32 %v512, %v554
      %v559 = vadd.f32 %v513, %v555
      %v560 = vadd.f32 %v514, %v556
      %561 = vrot.lane.b32.xlu0 %v452, 15
      %v562 = vpop.permute.xlu0 %561
      %563 = vrot.lane.b32.xlu0 %v454, 15
      %v564 = vpop.permute.xlu0 %563
      %565 = vrot.lane.b32.xlu0 %v453, 15
      %v566 = vpop.permute.xlu0 %565
      %567 = vrot.lane.b32.xlu0 %v455, 15
      %v568 = vpop.permute.xlu0 %567
      %vm569 = vcmp.lt.s32.totalorder %v477, 15
      %v570 = vsel %vm569, %v562, %v566
      %v571 = vsel %vm569, %v564, %v568
      %v572 = vsel %vm569, %v566, %v562
      %v573 = vsel %vm569, %v568, %v564
      %s574 = scalar_lea.vmem %s5, 2
      %v575 = vld [vmem:[%s574] ss:$8 sm:$0x3]
      %v577 = vlaneseq
      %v578 = vshrl.u32 %v577, 7
      %v579 = vsub.s32 0, %v578
      %v580 = vrot.slane %v575, %v579
      %v581 = vlaneseq
      %v582 = vshrl.u32 %v581, 7
      %v583 = vsub.s32 1, %v582
      %v584 = vrot.slane %v575, %v583
      %v587 = vmul.f32 %v572, %v580
      %v588 = vmul.f32 %v570, %v584
      %v589 = vmul.f32 %v573, %v580
      %v590 = vmul.f32 %v571, %v584
      %591 = vset.pattern.permute.xlu0 4
      %592 = vperm.xlu0 %591, %v254
      %v593 = vpop.permute.xlu0 %592
      %595 = vset.pattern.permute.xlu0 4
      %596 = vperm.xlu0 %595, %v255
      %v597 = vpop.permute.xlu0 %596
      %v599 = vmul.f32 %v587, %v593
      %v600 = vmul.f32 %v588, %v593
      %v601 = vmul.f32 %v589, %v597
      %v602 = vmul.f32 %v590, %v597
      %v603 = vadd.f32 %v557, %v599
      %v604 = vadd.f32 %v558, %v600
      %v605 = vadd.f32 %v559, %v601
      %v606 = vadd.f32 %v560, %v602
      %607 = vrot.lane.b32.xlu0 %v452, 1
      %v608 = vpop.permute.xlu0 %607
      %609 = vrot.lane.b32.xlu0 %v454, 1
      %v610 = vpop.permute.xlu0 %609
      %611 = vrot.lane.b32.xlu0 %v453, 1
      %v612 = vpop.permute.xlu0 %611
      %613 = vrot.lane.b32.xlu0 %v455, 1
      %v614 = vpop.permute.xlu0 %613
      %vm615 = vcmp.lt.s32.totalorder %v477, 1
      %v616 = vsel %vm615, %v608, %v612
      %v617 = vsel %vm615, %v610, %v614
      %v618 = vsel %vm615, %v612, %v608
      %v619 = vsel %vm615, %v614, %v610
      %s620 = scalar_lea.vmem %s5, 3
      %v621 = vld [vmem:[%s620] ss:$8 sm:$0x3]
      %v623 = vlaneseq
      %v624 = vshrl.u32 %v623, 7
      %v625 = vsub.s32 0, %v624
      %v626 = vrot.slane %v621, %v625
      %v627 = vlaneseq
      %v628 = vshrl.u32 %v627, 7
      %v629 = vsub.s32 1, %v628
      %v630 = vrot.slane %v621, %v629
      %v633 = vmul.f32 %v618, %v626
      %v634 = vmul.f32 %v616, %v630
      %v635 = vmul.f32 %v619, %v626
      %v636 = vmul.f32 %v617, %v630
      %637 = vset.pattern.permute.xlu0 5
      %638 = vperm.xlu0 %637, %v254
      %v639 = vpop.permute.xlu0 %638
      %641 = vset.pattern.permute.xlu0 5
      %642 = vperm.xlu0 %641, %v255
      %v643 = vpop.permute.xlu0 %642
      %v645 = vmul.f32 %v633, %v639
      %v646 = vmul.f32 %v634, %v639
      %v647 = vmul.f32 %v635, %v643
      %v648 = vmul.f32 %v636, %v643
      %v649 = vadd.f32 %v603, %v645
      %v650 = vadd.f32 %v604, %v646
      %v651 = vadd.f32 %v605, %v647
      %v652 = vadd.f32 %v606, %v648
      %653 = vrot.lane.b32.xlu0 %v452, 127
      %v654 = vpop.permute.xlu0 %653
      %655 = vrot.lane.b32.xlu0 %v454, 127
      %v656 = vpop.permute.xlu0 %655
      %657 = vrot.lane.b32.xlu0 %v453, 127
      %v658 = vpop.permute.xlu0 %657
      %659 = vrot.lane.b32.xlu0 %v455, 127
      %v660 = vpop.permute.xlu0 %659
      %vm661 = vcmp.lt.s32.totalorder %v477, 127
      %v662 = vsel %vm661, %v654, %v658
      %v663 = vsel %vm661, %v656, %v660
      %v664 = vsel %vm661, %v658, %v654
      %v665 = vsel %vm661, %v660, %v656
      %s666 = scalar_lea.vmem %s5, 5
      %v667 = vld [vmem:[%s666] ss:$8 sm:$0x3]
      %v669 = vlaneseq
      %v670 = vshrl.u32 %v669, 7
      %v671 = vsub.s32 0, %v670
      %v672 = vrot.slane %v667, %v671
      %v673 = vlaneseq
      %v674 = vshrl.u32 %v673, 7
      %v675 = vsub.s32 1, %v674
      %v676 = vrot.slane %v667, %v675
      %v679 = vmul.f32 %v662, %v672
      %v680 = vmul.f32 %v664, %v676
      %v681 = vmul.f32 %v663, %v672
      %v682 = vmul.f32 %v665, %v676
      %683 = vset.pattern.permute.xlu0 7
      %684 = vperm.xlu0 %683, %v254
      %v685 = vpop.permute.xlu0 %684
      %687 = vset.pattern.permute.xlu0 7
      %688 = vperm.xlu0 %687, %v255
      %v689 = vpop.permute.xlu0 %688
      %v691 = vmul.f32 %v679, %v685
      %v692 = vmul.f32 %v680, %v685
      %v693 = vmul.f32 %v681, %v689
      %v694 = vmul.f32 %v682, %v689
      %v695 = vadd.f32 %v649, %v691
      %v696 = vadd.f32 %v650, %v692
      %v697 = vadd.f32 %v651, %v693
      %v698 = vadd.f32 %v652, %v694
      %699 = vrot.lane.b32.xlu0 %v452, 113
      %v700 = vpop.permute.xlu0 %699
      %701 = vrot.lane.b32.xlu0 %v454, 113
      %v702 = vpop.permute.xlu0 %701
      %703 = vrot.lane.b32.xlu0 %v453, 113
      %v704 = vpop.permute.xlu0 %703
      %705 = vrot.lane.b32.xlu0 %v455, 113
      %v706 = vpop.permute.xlu0 %705
      %vm707 = vcmp.lt.s32.totalorder %v477, 113
      %v708 = vsel %vm707, %v700, %v704
      %v709 = vsel %vm707, %v702, %v706
      %v710 = vsel %vm707, %v704, %v700
      %v711 = vsel %vm707, %v706, %v702
      %s712 = scalar_lea.vmem %s5, 6
      %v713 = vld [vmem:[%s712] ss:$8 sm:$0x3]
      %v715 = vlaneseq
      %v716 = vshrl.u32 %v715, 7
      %v717 = vsub.s32 0, %v716
      %v718 = vrot.slane %v713, %v717
      %v719 = vlaneseq
      %v720 = vshrl.u32 %v719, 7
      %v721 = vsub.s32 1, %v720
      %v722 = vrot.slane %v713, %v721
      %v725 = vmul.f32 %v708, %v718
      %v726 = vmul.f32 %v710, %v722
      %v727 = vmul.f32 %v709, %v718
      %v728 = vmul.f32 %v711, %v722
      %729 = vset.pattern.permute.xlu0 8
      %730 = vperm.xlu0 %729, %v254
      %v731 = vpop.permute.xlu0 %730
      %733 = vset.pattern.permute.xlu0 8
      %734 = vperm.xlu0 %733, %v255
      %v735 = vpop.permute.xlu0 %734
      %v737 = vmul.f32 %v725, %v731
      %v738 = vmul.f32 %v726, %v731
      %v739 = vmul.f32 %v727, %v735
      %v740 = vmul.f32 %v728, %v735
      %v741 = vadd.f32 %v695, %v737
      %v742 = vadd.f32 %v696, %v738
      %v743 = vadd.f32 %v697, %v739
      %v744 = vadd.f32 %v698, %v740
      %745 = vrot.lane.b32.xlu0 %v452, 112
      %v746 = vpop.permute.xlu0 %745
      %747 = vrot.lane.b32.xlu0 %v454, 112
      %v748 = vpop.permute.xlu0 %747
      %749 = vrot.lane.b32.xlu0 %v453, 112
      %v750 = vpop.permute.xlu0 %749
      %751 = vrot.lane.b32.xlu0 %v455, 112
      %v752 = vpop.permute.xlu0 %751
      %vm753 = vcmp.lt.s32.totalorder %v477, 112
      %v754 = vsel %vm753, %v746, %v750
      %v755 = vsel %vm753, %v748, %v752
      %v756 = vsel %vm753, %v750, %v746
      %v757 = vsel %vm753, %v752, %v748
      %s758 = scalar_lea.vmem %s5, 7
      %v759 = vld [vmem:[%s758] ss:$8 sm:$0x3]
      %v761 = vlaneseq
      %v762 = vshrl.u32 %v761, 7
      %v763 = vsub.s32 0, %v762
      %v764 = vrot.slane %v759, %v763
      %v765 = vlaneseq
      %v766 = vshrl.u32 %v765, 7
      %v767 = vsub.s32 1, %v766
      %v768 = vrot.slane %v759, %v767
      %v771 = vmul.f32 %v754, %v764
      %v772 = vmul.f32 %v756, %v768
      %v773 = vmul.f32 %v755, %v764
      %v774 = vmul.f32 %v757, %v768
      %775 = vset.pattern.permute.xlu0 9
      %776 = vperm.xlu0 %775, %v254
      %v777 = vpop.permute.xlu0 %776
      %779 = vset.pattern.permute.xlu0 9
      %780 = vperm.xlu0 %779, %v255
      %v781 = vpop.permute.xlu0 %780
      %v783 = vmul.f32 %v771, %v777
      %v784 = vmul.f32 %v772, %v777
      %v785 = vmul.f32 %v773, %v781
      %v786 = vmul.f32 %v774, %v781
      %v787 = vadd.f32 %v741, %v783
      %v788 = vadd.f32 %v742, %v784
      %v789 = vadd.f32 %v743, %v785
      %v790 = vadd.f32 %v744, %v786
      %791 = vrot.lane.b32.xlu0 %v452, 111
      %v792 = vpop.permute.xlu0 %791
      %793 = vrot.lane.b32.xlu0 %v454, 111
      %v794 = vpop.permute.xlu0 %793
      %795 = vrot.lane.b32.xlu0 %v453, 111
      %v796 = vpop.permute.xlu0 %795
      %797 = vrot.lane.b32.xlu0 %v455, 111
      %v798 = vpop.permute.xlu0 %797
      %vm799 = vcmp.lt.s32.totalorder %v477, 111
      %v800 = vsel %vm799, %v792, %v796
      %v801 = vsel %vm799, %v794, %v798
      %v802 = vsel %vm799, %v796, %v792
      %v803 = vsel %vm799, %v798, %v794
      %s804 = scalar_lea.vmem %s5, 16
      %v805 = vld [vmem:[%s804] ss:$8 sm:$0x3]
      %v807 = vlaneseq
      %v808 = vshrl.u32 %v807, 7
      %v809 = vsub.s32 0, %v808
      %v810 = vrot.slane %v805, %v809
      %v811 = vlaneseq
      %v812 = vshrl.u32 %v811, 7
      %v813 = vsub.s32 1, %v812
      %v814 = vrot.slane %v805, %v813
      %v817 = vmul.f32 %v800, %v810
      %v818 = vmul.f32 %v802, %v814
      %v819 = vmul.f32 %v801, %v810
      %v820 = vmul.f32 %v803, %v814
      %821 = vset.pattern.permute.xlu0 10
      %822 = vperm.xlu0 %821, %v254
      %v823 = vpop.permute.xlu0 %822
      %825 = vset.pattern.permute.xlu0 10
      %826 = vperm.xlu0 %825, %v255
      %v827 = vpop.permute.xlu0 %826
      %v829 = vmul.f32 %v817, %v823
      %v830 = vmul.f32 %v818, %v823
      %v831 = vmul.f32 %v819, %v827
      %v832 = vmul.f32 %v820, %v827
      %v833 = vadd.f32 %v787, %v829
      %v834 = vadd.f32 %v788, %v830
      %v835 = vadd.f32 %v789, %v831
      %v836 = vadd.f32 %v790, %v832
      %837 = vset.pattern.permute.xlu0 1
      %838 = vperm.xlu0 %837, %v254
      %v839 = vpop.permute.xlu0 %838
      %841 = vset.pattern.permute.xlu0 1
      %842 = vperm.xlu0 %841, %v255
      %v843 = vpop.permute.xlu0 %842
      %v845 = vadd.f32 %v833, %v839
      %v846 = vadd.f32 %v834, %v839
      %v847 = vadd.f32 %v835, %v843
      %v848 = vadd.f32 %v836, %v843
      %v849 = vmul.f32 %v845, 0.5
      %v850 = vmul.f32 %v846, 0.5
      %v851 = vmul.f32 %v847, 0.5
      %v852 = vmul.f32 %v848, 0.5
      %v853 = vmul.f32 %v845, 0.70710677
      %v854 = vmul.f32 %v846, 0.70710677
      %v855 = vmul.f32 %v847, 0.70710677
      %v856 = vmul.f32 %v848, 0.70710677
      %v857 = vand.u32 2147483647, %v853
      %v858 = vand.u32 2147483647, %v854
      %v859 = vand.u32 2147483647, %v855
      %v860 = vand.u32 2147483647, %v856
      %v861 = vmul.f32 %v857, 0.3275911
      %v862 = vmul.f32 %v858, 0.3275911
      %v863 = vmul.f32 %v859, 0.3275911
      %v864 = vmul.f32 %v860, 0.3275911
      %v865 = vadd.f32 %v861, 1.0
      %v866 = vadd.f32 %v862, 1.0
      %v867 = vadd.f32 %v863, 1.0
      %v868 = vadd.f32 %v864, 1.0
      %v869 = vrcp.pop %v865
      %v870 = vrcp.pop %v866
      %v871 = vrcp.pop %v867
      %v872 = vrcp.pop %v868
      %v873 = vmul.f32 %v869, 1.0614054
      %v874 = vmul.f32 %v870, 1.0614054
      %v875 = vmul.f32 %v871, 1.0614054
      %v876 = vmul.f32 %v872, 1.0614054
      %v877 = vadd.f32 %v873, -1.4531521
      %v878 = vadd.f32 %v874, -1.4531521
      %v879 = vadd.f32 %v875, -1.4531521
      %v880 = vadd.f32 %v876, -1.4531521
      %v881 = vmul.f32 %v869, %v877
      %v882 = vmul.f32 %v870, %v878
      %v883 = vmul.f32 %v871, %v879
      %v884 = vmul.f32 %v872, %v880
      %v885 = vadd.f32 %v881, 1.4214138
      %v886 = vadd.f32 %v882, 1.4214138
      %v887 = vadd.f32 %v883, 1.4214138
      %v888 = vadd.f32 %v884, 1.4214138
      %v889 = vmul.f32 %v869, %v885
      %v890 = vmul.f32 %v870, %v886
      %v891 = vmul.f32 %v871, %v887
      %v892 = vmul.f32 %v872, %v888
      %v893 = vadd.f32 %v889, -0.28449672
      %v894 = vadd.f32 %v890, -0.28449672
      %v895 = vadd.f32 %v891, -0.28449672
      %v896 = vadd.f32 %v892, -0.28449672
      %v897 = vmul.f32 %v869, %v893
      %v898 = vmul.f32 %v870, %v894
      %v899 = vmul.f32 %v871, %v895
      %v900 = vmul.f32 %v872, %v896
      %v901 = vadd.f32 %v897, 0.2548296
      %v902 = vadd.f32 %v898, 0.2548296
      %v903 = vadd.f32 %v899, 0.2548296
      %v904 = vadd.f32 %v900, 0.2548296
      %v905 = vmul.f32 %v869, %v901
      %v906 = vmul.f32 %v870, %v902
      %v907 = vmul.f32 %v871, %v903
      %v908 = vmul.f32 %v872, %v904
      %v909 = vsub.f32 0.0, %v857
      %v910 = vsub.f32 0.0, %v858
      %v911 = vsub.f32 0.0, %v859
      %v912 = vsub.f32 0.0, %v860
      %v913 = vmul.f32 %v909, %v857
      %v914 = vmul.f32 %v910, %v858
      %v915 = vmul.f32 %v911, %v859
      %v916 = vmul.f32 %v912, %v860
      %v917 = vmul.f32 %v913, 1.442695
      %v918 = vpow.pop %v917
      %v919 = vmul.f32 %v914, 1.442695
      %v920 = vpow.pop %v919
      %v921 = vmul.f32 %v915, 1.442695
      %v922 = vpow.pop %v921
      %v923 = vmul.f32 %v916, 1.442695
      %v924 = vpow.pop %v923
      %v925 = vmul.f32 %v905, %v918
      %v926 = vmul.f32 %v906, %v920
      %v927 = vmul.f32 %v907, %v922
      %v928 = vmul.f32 %v908, %v924
      %v929 = vsub.f32 1.0, %v925
      %v930 = vsub.f32 1.0, %v926
      %v931 = vsub.f32 1.0, %v927
      %v932 = vsub.f32 1.0, %v928
      %vm933 = vcmp.ge.f32.partialorder %v853, 0.0
      %vm934 = vcmp.ge.f32.partialorder %v854, 0.0
      %vm935 = vcmp.ge.f32.partialorder %v855, 0.0
      %vm936 = vcmp.ge.f32.partialorder %v856, 0.0
      %v937 = vsub.f32 0.0, %v929
      %v938 = vsub.f32 0.0, %v930
      %v939 = vsub.f32 0.0, %v931
      %v940 = vsub.f32 0.0, %v932
      %v941 = vsel %vm933, %v929, %v937
      %v942 = vsel %vm934, %v930, %v938
      %v943 = vsel %vm935, %v931, %v939
      %v944 = vsel %vm936, %v932, %v940
      %v945 = vadd.f32 %v941, 1.0
      %v946 = vadd.f32 %v942, 1.0
      %v947 = vadd.f32 %v943, 1.0
      %v948 = vadd.f32 %v944, 1.0
      %v949 = vmul.f32 %v849, %v945
      %v950 = vmul.f32 %v850, %v946
      %v951 = vmul.f32 %v851, %v947
      %v952 = vmul.f32 %v852, %v948
      %v953 = vadd.f32 %v949, %v950
      %954 = vadd.xlane.f32.xlu0 %v953
      %v955 = vpop.xlane.xlu0 %954
      %v956 = vadd.f32 %v951, %v952
      %957 = vadd.xlane.f32.xlu0 %v956
      %v958 = vpop.xlane.xlu0 %957
      %v959 = vrcp.pop 256.0
      %v960 = vmul.f32 %v955, %v959
      %v961 = vmul.f32 %v958, %v959
      %v962 = vmul.f32 %v254, %v960
      %v963 = vmul.f32 %v255, %v961
      %vm964 = vcmask 105560
      %v965 = vsel %vm964, %v962, 0.0
      %v966 = vsel %vm964, %v963, 0.0
      %v967 = vadd.f32 %v965, %v966
      %v968 = vrot.slane %v967, 4
      %v969 = vadd.f32 %v967, %v968
      %v970 = vrot.slane %v969, 2
      %v971 = vadd.f32 %v969, %v970
      %v972 = vrot.slane %v971, 1
      %v973 = vadd.f32 %v971, %v972
      %v974 = vmul.f32 %v973, 0.5
      %v975 = vmul.f32 %v973, 0.70710677
      %v976 = vand.u32 2147483647, %v975
      %v977 = vmul.f32 %v976, 0.3275911
      %v978 = vadd.f32 %v977, 1.0
      %v979 = vrcp.pop %v978
      %v980 = vmul.f32 %v979, 1.0614054
      %v981 = vadd.f32 %v980, -1.4531521
      %v982 = vmul.f32 %v979, %v981
      %v983 = vadd.f32 %v982, 1.4214138
      %v984 = vmul.f32 %v979, %v983
      %v985 = vadd.f32 %v984, -0.28449672
      %v986 = vmul.f32 %v979, %v985
      %v987 = vadd.f32 %v986, 0.2548296
      %v988 = vmul.f32 %v979, %v987
      %v989 = vsub.f32 0.0, %v976
      %v990 = vmul.f32 %v989, %v976
      %v991 = vmul.f32 %v990, 1.442695
      %v992 = vpow.pop %v991
      %v993 = vmul.f32 %v988, %v992
      %v994 = vsub.f32 1.0, %v993
      %vm995 = vcmp.ge.f32.partialorder %v975, 0.0
      %v996 = vsub.f32 0.0, %v994
      %v997 = vsel %vm995, %v994, %v996
      %v998 = vadd.f32 %v997, 1.0
      %v999 = vmul.f32 %v974, %v998
      %1001 = vrot.lane.b32.xlu0 %v999, 2
      %v1002 = vpop.permute.xlu0 %1001
      %v1004 = vmul.f32 %v254, %v1002
      %v1005 = vmul.f32 %v255, %v1002
      %1008 = vrot.lane.b32.xlu0 %v1004, 115
      %v1009 = vpop.permute.xlu0 %1008
      %1010 = vrot.lane.b32.xlu0 %v1005, 115
      %v1011 = vpop.permute.xlu0 %1010
      %vm1014 = vcmask 15360
      %v1015 = vsel %vm1014, %v1009, 0.0
      %1016 = vadd.xlane.f32.xlu0 %v1015
      %v1017 = vpop.xlane.xlu0 %1016
      %v1018 = vsel %vm1014, %v1011, 0.0
      %1019 = vadd.xlane.f32.xlu0 %v1018
      %v1020 = vpop.xlane.xlu0 %1019
      %v1021 = vmul.f32 %v1017, 0.5
      %v1022 = vmul.f32 %v1020, 0.5
      %v1023 = vtanh.pop %v1021
      %v1024 = vtanh.pop %v1022
      %v1025 = vadd.f32 %v1023, 1.0
      %v1026 = vadd.f32 %v1024, 1.0
      %v1027 = vmul.f32 %v1025, 0.5
      %v1028 = vmul.f32 %v1026, 0.5
      %v1029 = vmul.f32 %v949, %v1027
      %v1030 = vmul.f32 %v950, %v1027
      %v1031 = vmul.f32 %v951, %v1028
      %v1032 = vmul.f32 %v952, %v1028
      %v1033 = vld [vmem:[%s3] sm:$0xff]
      %v1034 = vld [vmem:[%s4] sm:$0xff]
      %1036 = vset.pattern.permute.xlu0 0
      %1037 = vperm.xlu0 %1036, %v1034
      %v1038 = vpop.permute.xlu0 %1037
      %vm1040 = vcmask 130048
      %v1042 = vsel %vm1040, %v1033, 0
      %1044 = vmatprep.subr.mxu0 0.0
      %1045 = vmatpush1.msra.mxu0 0.0
      %1046 = vmatprep.subr.mxu0 0.0
      %1047 = vmatpush1.msra.mxu0 0.0
      %1048 = vmatprep.subr.mxu0 0.0
      %1049 = vmatpush1.msra.mxu0 0.0
      %1050 = vmatprep.subr.mxu0 0.0
      %1051 = vmatpush1.msra.mxu0 0.0
      %1052 = vmatprep.subr.mxu0 0.0
      %1053 = vmatpush1.msra.mxu0 0.0
      %1054 = vmatprep.subr.mxu0 0.0
      %1055 = vmatpush1.msra.mxu0 0.0
      %1056 = vmatprep.subr.mxu0 0.0
      %1057 = vmatpush1.msra.mxu0 0.0
      %1058 = vmatprep.subr.mxu0 0.0
      %1059 = vmatpush1.msra.mxu0 0.0
      %1060 = vmatprep.subr.mxu0 0.0
      %1061 = vmatpush1.msra.mxu0 0.0
      %1062 = vmatprep.subr.mxu0 0.0
      %1063 = vmatpush1.msra.mxu0 0.0
      %1064 = vmatprep.subr.mxu0 0.0
      %1065 = vmatpush1.msra.mxu0 0.0
      %1066 = vmatprep.subr.mxu0 0.0
      %1067 = vmatpush1.msra.mxu0 0.0
      %1068 = vmatprep.subr.mxu0 0.0
      %1069 = vmatpush1.msra.mxu0 0.0
      %1070 = vmatprep.subr.mxu0 0.0
      %1071 = vmatpush1.msra.mxu0 0.0
      %1072 = vmatprep.subr.mxu0 %v1032
      %1073 = vmatpush1.msra.mxu0 %v1031
      %1074 = vmatprep.subr.mxu0 %v1030
      %1075 = vmatpush1.msra.mxu0 %v1029
      %1076 = vmatprep.subr.mxu0 0.0
      %1077 = vmatpush2.msra.mxu0 0.0
      %1078 = vmatprep.subr.mxu0 0.0
      %1079 = vmatpush2.msra.mxu0 0.0
      %1080 = vmatprep.subr.mxu0 0.0
      %1081 = vmatpush2.msra.mxu0 0.0
      %1082 = vmatprep.subr.mxu0 0.0
      %1083 = vmatpush2.msra.mxu0 0.0
      %1084 = vmatprep.subr.mxu0 0.0
      %1085 = vmatpush2.msra.mxu0 0.0
      %1086 = vmatprep.subr.mxu0 0.0
      %1087 = vmatpush2.msra.mxu0 0.0
      %1088 = vmatprep.subr.mxu0 0.0
      %1089 = vmatpush2.msra.mxu0 0.0
      %1090 = vmatprep.subr.mxu0 0.0
      %1091 = vmatpush2.msra.mxu0 0.0
      %1092 = vmatprep.subr.mxu0 0.0
      %1093 = vmatpush2.msra.mxu0 0.0
      %1094 = vmatprep.subr.mxu0 0.0
      %1095 = vmatpush2.msra.mxu0 0.0
      %1096 = vmatprep.subr.mxu0 0.0
      %1097 = vmatpush2.msra.mxu0 0.0
      %1098 = vmatprep.subr.mxu0 0.0
      %1099 = vmatpush2.msra.mxu0 0.0
      %1100 = vmatprep.subr.mxu0 0.0
      %1101 = vmatpush2.msra.mxu0 0.0
      %1102 = vmatprep.subr.mxu0 0.0
      %1103 = vmatpush2.msra.mxu0 0.0
      %1104 = vmatprep.subr.mxu0 0.0
      %1105 = vmatpush2.msra.mxu0 0.0
      %1106 = vmatprep.subr.mxu0 0.0
      %1107 = vmatpush2.msra.mxu0 0.0
      %1108 = vmatprep.mubr.f32.mxu0 0.0
      %1109 = vmatmul.mubr.f32.gmra.mxu0 %v1042
      %v1110 = vpop.f32.mrf.mxu0
      %v1111 = vadd.f32 %v1038, %v1110
      %v1112 = vpop.f32.mrf.mxu0
      %v1113 = vadd.f32 %v1038, %v1112
      %1114 = vdwg.mxu0
      %v1115 = vadd.f32 %v1111, %v252
      %v1116 = vadd.f32 %v1113, %v253
      %1117 = vst [vmem:[%s251] sm:$0xff] %v1115
      %1118 = vst [vmem:[%s251 + $0x8] sm:$0xff] %v1116
      %p1119 = scmp.lt.s32.totalorder %s17, 1
      %s1120 = scalar_select %p1119, %s17, 1
      %s1121 = smul.addr %s1120, 2
      %s1122 = smul.addr %s1121, 8
      %s1123 = scalar_lea.vmem %s6, %s1122
      // Predicated region
      $region45: #{mbconv_forward.1} parent=43 // pred_check
        %p1124 = pneg %p166
      $region46: #{mbconv_forward.1} parent=43 // pred_check_branch
        %1126 = sbr.rel (%p1124) target = $region48
      $region47: #{mbconv_forward.1} parent=43 // pred_region
        _
      $region48: #{mbconv_forward.1} parent=43 // pred_fallthru
        _
    $region44: #{mbconv_forward.1} parent=5 // pred_fallthru
      _
    %p1127 = scmp.le.s32.totalorder 2, %s12
    // Predicated region
    $region49: #{mbconv_forward.1} parent=5 // pred_check
      %p1128 = pneg %p1127
    $region50: #{mbconv_forward.1} parent=5 // pred_check_branch
      %1130 = sbr.rel (%p1128) target = $region52
    $region51: #{mbconv_forward.1} parent=5 // pred_region
      %s1131 = ssub.s32 %s12, 2
      // Predicated region
      $region53: #{mbconv_forward.1} parent=51 // pred_check
        %p1132 = pneg %p172
      $region54: #{mbconv_forward.1} parent=51 // pred_check_branch
        %1134 = sbr.rel (%p1132) target = $region56
      $region55: #{mbconv_forward.1} parent=51 // pred_region
        %p1135 = scmp.lt.s32.totalorder %s18, 1
        %s1136 = scalar_select %p1135, %s18, 1
        %s1137 = smul.addr %s1136, 2
        %s1138 = smul.addr %s1137, 8
        %s1139 = scalar_lea.vmem %s6, %s1138
      $region56: #{mbconv_forward.1} parent=51 // pred_fallthru
        _
    $region52: #{mbconv_forward.1} parent=5 // pred_fallthru
      _
  $region6: #{mbconv_forward.1} parent=0 // loop_footer
    %s16 = sadd.s32 1, %s12
  $region7: #{mbconv_forward.1} parent=0 // loop_footer_branch
    %11 = sbr.rel target = $region3
  $region8: #{mbconv_forward.1} parent=0 // loop_exit
    _

</llo_original>
